<compile_context>
chip_gen: v5e
topology: v5e:2x2
jax: 0.10.0
libtpu: 0.0.40
codegen_flags: <defaults>
</compile_context>

<pallas_src>
import functools
import math

import jax
import jax.numpy as jnp
from jax.experimental import pallas as pl
from jax.experimental.pallas import tpu as pltpu


def _mha_kernel(*refs, n_head, d_k, d_v, block_b, len_q, len_k, eps,
                compute_dtype, approx_softmax, attn_type, has_fc,
                fuse_qkv, has_mask, return_attn):
    it = iter(refs)
    if fuse_qkv:
        x_ref = next(it)
        w_qkv_ref = next(it)
    else:
        q_ref, k_ref, v_ref = next(it), next(it), next(it)
        wq_ref, wk_ref, wv_ref = next(it), next(it), next(it)
    wfc_ref = next(it) if has_fc else None
    mask_ref = next(it) if has_mask else None
    gamma_ref, beta_ref = next(it), next(it)
    out_ref = next(it)
    attn_ref = next(it) if return_attn else None

    f32 = jnp.float32
    cd = compute_dtype
    H = n_head

    # ---- Q/K/V projections as slab matmuls over all rows of the batch block.
    #      Operands arrive already in `compute_dtype`; accumulate in f32.
    if fuse_qkv:
        x_in = x_ref[...]                                   # (rq, d_model)
        residual = x_in.astype(f32)
        proj = jnp.dot(x_in, w_qkv_ref[...], preferred_element_type=f32)
        Q = proj[:, : H * d_k]
        K = proj[:, H * d_k: 2 * H * d_k]
        V = proj[:, 2 * H * d_k:]
    else:
        q_in = q_ref[...]
        residual = q_in.astype(f32)
        Q = jnp.dot(q_in, wq_ref[...], preferred_element_type=f32)
        K = jnp.dot(k_ref[...], wk_ref[...], preferred_element_type=f32)
        V = jnp.dot(v_ref[...], wv_ref[...], preferred_element_type=f32)

    # ---- Head split: one reshape + transpose per tensor into the
    #      (block_b*H, len, d) batched layout used by the contractions.
    def split_heads(x, length, d):
        x = x.reshape(block_b, length, H, d).transpose(0, 2, 1, 3)
        return x.reshape(block_b * H, length, d)

    Qh = split_heads(Q, len_q, d_k).astype(cd)
    Kh = split_heads(K, len_k, d_k).astype(cd)
    Vh = split_heads(V, len_k, d_v).astype(cd)

    # ---- Scaled dot-product attention, batched over (batch, head).
    inv_temp = jnp.float32(1.0 / math.sqrt(d_k))
    s = jnp.einsum('bqd,bkd->bqk', Qh, Kh,
                   preferred_element_type=f32) * inv_temp

    if has_mask:
        # masked_fill(attn_mask, -1e6): mask bias is -1e6 where masked, 0 else;
        # broadcast over heads and *replace* (not add) for exact semantics.
        bias = mask_ref[...][:, None, :, :]                 # (bb, 1, q, k)
        s4 = s.reshape(block_b, H, len_q, len_k)
        s = jnp.where(bias < 0.0, bias, s4).reshape(block_b * H, len_q, len_k)

    if attn_type == 'softmax':
        # Softmax over keys (PyTorch Softmax(dim=2)); stays in f32.
        s = s - jnp.max(s, axis=-1, keepdims=True)
        e = jnp.exp(s)
        p = e * pl.reciprocal(jnp.sum(e, axis=-1, keepdims=True),
                              approx=approx_softmax)
    else:  # 'sigmoid' attention variant of ScaledDotProductAttention
        p = jax.nn.sigmoid(s)

    if return_attn:
        attn_ref[...] = p.astype(attn_ref.dtype)            # single dense store

    o = jnp.einsum('bqk,bkd->bqd', p.astype(cd), Vh,
                   preferred_element_type=f32)               # (bb*H, q, d_v)

    # ---- Merge heads back: (bb*H, q, d_v) -> (bb*q, H*d_v)
    o = o.reshape(block_b, H, len_q, d_v).transpose(0, 2, 1, 3)
    o = o.reshape(block_b * len_q, H * d_v)

    if has_fc:                 # module defines self.fc only when n_head > 1
        o = jnp.dot(o.astype(cd), wfc_ref[...], preferred_element_type=f32)

    # Dropout (eval) == identity; residual add + LayerNorm(d_model) in f32.
    # One-pass statistics: var = E[x^2] - mean^2 (halves the XLU reductions).
    x = o + residual
    mean = jnp.mean(x, axis=-1, keepdims=True)
    var = jnp.mean(x * x, axis=-1, keepdims=True) - mean * mean
    y = (x - mean) * jax.lax.rsqrt(var + eps)
    out_ref[...] = (y * gamma_ref[...] + beta_ref[...]).astype(out_ref.dtype)


def _estimate_vmem_bytes(block_b, *, len_q, len_k, d_model, n_head, d_k, d_v,
                         in_bytes, out_bytes, attn_bytes, return_attn, has_fc):
    """Rough per-grid-step VMEM footprint (double-buffered I/O + f32 temps)."""
    rq, rk = block_b * len_q, block_b * len_k
    bh = block_b * n_head
    io = 2 * (rq + 2 * rk) * d_model * in_bytes          # q,k,v blocks (x2 buf)
    io += 2 * rq * d_model * out_bytes                    # output block (x2 buf)
    if return_attn:
        io += 2 * bh * len_q * len_k * attn_bytes
    w = 2 * d_model * n_head * (2 * d_k + d_v) * in_bytes
    if has_fc:
        w += 2 * n_head * d_v * d_model * in_bytes
    f = 4  # f32 intermediates
    tmp = 2 * f * (rq * n_head * d_k + rk * n_head * (d_k + d_v))  # Q/K/V + split
    tmp += 3 * f * bh * len_q * len_k                              # s, e, p
    tmp += 2 * f * rq * n_head * d_v                               # o + merge
    tmp += 3 * f * rq * d_model                                    # fc out + LN
    return io + w + tmp


def _choose_block_b(b, len_q, len_k, est_fn, vmem_budget, target_steps):
    """Largest batch block that is 8-row aligned, fits the VMEM budget and
    still leaves >= target_steps grid steps for pipelining / dual-TC."""
    def aligned(bb):
        return (bb * len_q) % 8 == 0 and (bb * len_k) % 8 == 0
    cands = [bb for bb in range(1, b + 1)
             if b % bb == 0 and (aligned(bb) or bb == b)]
    fitting = [bb for bb in cands if est_fn(bb) <= vmem_budget]
    pool = fitting if fitting else cands
    for bb in sorted(pool, reverse=True):
        if b // bb >= target_steps:
            return bb
    return min(pool)          # most grid steps we can get


def multi_head_attention(q, k, v, wq_t, wk_t, wv_t, wfc_t, gamma, beta, *,
                         n_head, d_k, d_v, attn_mask=None, block_b=None,
                         return_attn=False, compute_dtype=jnp.bfloat16,
                         approx_softmax=None, attn_type='softmax',
                         out_dtype=jnp.float32, attn_dtype=jnp.float32,
                         eps=1e-5, fuse_qkv=None, target_steps=4,
                         vmem_limit_bytes=None):
    b, len_q, d_model = q.shape
    len_k = k.shape[1]
    assert v.shape[1] == len_k

    has_fc = n_head > 1
    has_mask = attn_mask is not None
    if approx_softmax is None:
        # exact reciprocal whenever the attention maps are consumed numerically
        approx_softmax = not return_attn
    if fuse_qkv is None:
        fuse_qkv = (k is q) and (v is q)       # self-attention fast path
    if fuse_qkv:
        assert len_k == len_q

    # ---- VMEM-budgeted batch-block selection (>= target_steps grid steps).
    itemsize_in = jnp.dtype(compute_dtype).itemsize
    est_fn = functools.partial(
        _estimate_vmem_bytes, len_q=len_q, len_k=len_k, d_model=d_model,
        n_head=n_head, d_k=d_k, d_v=d_v, in_bytes=itemsize_in,
        out_bytes=jnp.dtype(out_dtype).itemsize,
        attn_bytes=jnp.dtype(attn_dtype).itemsize,
        return_attn=return_attn, has_fc=has_fc)
    budget = int(0.75 * vmem_limit_bytes) if vmem_limit_bytes else 24 * 2**20
    if block_b is None:
        block_b = _choose_block_b(b, len_q, len_k, est_fn, budget, target_steps)
    assert b % block_b == 0, "block_b must divide the batch size"
    nb = b // block_b
    if nb > 1:
        assert (block_b * len_q) % 8 == 0 and (block_b * len_k) % 8 == 0, (
            "block rows must be 8-aligned when the batch is tiled")
    if vmem_limit_bytes is None:
        need = est_fn(block_b)
        if need > 12 * 2**20:
            vmem_limit_bytes = int(min(max(2 * need, 32 * 2**20), 60 * 2**20))

    rq = block_b * len_q
    rk = block_b * len_k

    # ---- Hoist layout + dtype work to the wrapper (trace-time): flatten batch
    #      into rows and stream operands already in the MXU compute dtype.
    cast_in = lambda x: x.astype(compute_dtype)
    q2 = cast_in(q.reshape(b * len_q, d_model))
    gamma2 = gamma.reshape(1, d_model).astype(jnp.float32)
    beta2 = beta.reshape(1, d_model).astype(jnp.float32)

    inputs, in_specs = [], []
    if fuse_qkv:
        w_qkv_t = jnp.concatenate([wq_t, wk_t, wv_t], axis=1).astype(compute_dtype)
        inputs += [q2, w_qkv_t]
        in_specs += [
            pl.BlockSpec((rq, d_model), lambda i: (i, 0)),
            pl.BlockSpec((d_model, n_head * (2 * d_k + d_v)), lambda i: (0, 0)),
        ]
    else:
        k2 = cast_in(k.reshape(b * len_k, d_model))
        v2 = cast_in(v.reshape(b * len_k, d_model))
        inputs += [q2, k2, v2, cast_in(wq_t), cast_in(wk_t), cast_in(wv_t)]
        in_specs += [
            pl.BlockSpec((rq, d_model), lambda i: (i, 0)),
            pl.BlockSpec((rk, d_model), lambda i: (i, 0)),
            pl.BlockSpec((rk, d_model), lambda i: (i, 0)),
            pl.BlockSpec((d_model, n_head * d_k), lambda i: (0, 0)),
            pl.BlockSpec((d_model, n_head * d_k), lambda i: (0, 0)),
            pl.BlockSpec((d_model, n_head * d_v), lambda i: (0, 0)),
        ]
    if has_fc:
        inputs.append(cast_in(wfc_t))
        in_specs.append(pl.BlockSpec((n_head * d_v, d_model), lambda i: (0, 0)))
    if has_mask:
        mask_bias = jnp.where(attn_mask, jnp.float32(-1e6),
                              jnp.float32(0.0)).astype(jnp.float32)
        inputs.append(mask_bias)
        in_specs.append(pl.BlockSpec((block_b, len_q, len_k), lambda i: (i, 0, 0)))
    inputs += [gamma2, beta2]
    in_specs += [pl.BlockSpec((1, d_model), lambda i: (0, 0)),
                 pl.BlockSpec((1, d_model), lambda i: (0, 0))]

    out_shapes = [jax.ShapeDtypeStruct((b * len_q, d_model), out_dtype)]
    out_specs = [pl.BlockSpec((rq, d_model), lambda i: (i, 0))]
    if return_attn:
        # Kernel-natural (batch, head)-batched layout; reordered in the wrapper.
        out_shapes.append(
            jax.ShapeDtypeStruct((b * n_head, len_q, len_k), attn_dtype))
        out_specs.append(
            pl.BlockSpec((block_b * n_head, len_q, len_k), lambda i: (i, 0, 0)))

    kernel = functools.partial(
        _mha_kernel, n_head=n_head, d_k=d_k, d_v=d_v, block_b=block_b,
        len_q=len_q, len_k=len_k, eps=eps, compute_dtype=compute_dtype,
        approx_softmax=approx_softmax, attn_type=attn_type, has_fc=has_fc,
        fuse_qkv=fuse_qkv, has_mask=has_mask, return_attn=return_attn)

    results = pl.pallas_call(
        kernel,
        out_shape=tuple(out_shapes),
        grid_spec=pltpu.PrefetchScalarGridSpec(
            num_scalar_prefetch=0,
            grid=(nb,),
            in_specs=in_specs,
            out_specs=tuple(out_specs)),
        compiler_params=pltpu.CompilerParams(
            dimension_semantics=("parallel",),
            vmem_limit_bytes=vmem_limit_bytes),
    )(*inputs)

    out = results[0].reshape(b, len_q, d_model)
    if not return_attn:
        return out

    # PyTorch attn layout is head-major: (n_head*b, len_q, len_k), index h*b+bi.
    attn = results[1].reshape(b, n_head, len_q, len_k)
    attn = attn.transpose(1, 0, 2, 3).reshape(n_head * b, len_q, len_k)
    return out, attn


if __name__ == "__main__":
    # Small shapes consistent with the module's forward.
    b, seq, d_model = 2, 8, 32
    n_head, d_k, d_v = 4, 8, 8

    key = jax.random.PRNGKey(0)
    kq, kk, kv, kwq, kwk, kwv, kfc = jax.random.split(key, 7)

    q = jax.random.normal(kq, (b, seq, d_model), dtype=jnp.float32)
    k = jax.random.normal(kk, (b, seq, d_model), dtype=jnp.float32)
    v = jax.random.normal(kv, (b, seq, d_model), dtype=jnp.float32)

    # Deterministic parameter init mirroring the module's __init__.
    std_qk = math.sqrt(2.0 / (d_model + d_k))
    std_v = math.sqrt(2.0 / (d_model + d_v))
    std_fc = math.sqrt(2.0 / (n_head * d_v + d_model))

    # PyTorch Linear weight is (out, in); pre-transpose to (in, out).
    wq_t = (std_qk * jax.random.normal(kwq, (n_head * d_k, d_model))).T.astype(jnp.float32)
    wk_t = (std_qk * jax.random.normal(kwk, (n_head * d_k, d_model))).T.astype(jnp.float32)
    wv_t = (std_v * jax.random.normal(kwv, (n_head * d_v, d_model))).T.astype(jnp.float32)
    wfc_t = (std_fc * jax.random.normal(kfc, (d_model, n_head * d_v))).T.astype(jnp.float32)

    gamma = jnp.ones((d_model,), dtype=jnp.float32)   # LayerNorm weight
    beta = jnp.zeros((d_model,), dtype=jnp.float32)   # LayerNorm bias

    # Pure-JAX reference (mirrors the PyTorch forward, eval mode).
    def ref_fwd(q, k, v, mask=None):
        Q = (q @ wq_t).reshape(b, seq, n_head, d_k).transpose(2, 0, 1, 3).reshape(-1, seq, d_k)
        K = (k @ wk_t).reshape(b, seq, n_head, d_k).transpose(2, 0, 1, 3).reshape(-1, seq, d_k)
        V = (v @ wv_t).reshape(b, seq, n_head, d_v).transpose(2, 0, 1, 3).reshape(-1, seq, d_v)
        s = jnp.einsum('bqd,bkd->bqk', Q, K) / math.sqrt(d_k)
        if mask is not None:
            s = jnp.where(jnp.tile(mask, (n_head, 1, 1)), -1e6, s)
        a = jax.nn.softmax(s, axis=-1)
        o = jnp.einsum('bqk,bkd->bqd', a, V)
        o = o.reshape(n_head, b, seq, d_v).transpose(1, 2, 0, 3).reshape(b, seq, -1)
        o = o @ wfc_t
        x = o + q
        mean = x.mean(-1, keepdims=True)
        var = ((x - mean) ** 2).mean(-1, keepdims=True)
        return (x - mean) / jnp.sqrt(var + 1e-5) * gamma + beta, a

    mha = functools.partial(multi_head_attention, n_head=n_head, d_k=d_k, d_v=d_v)

    # 1) Strict f32 path, attention maps returned (exact softmax reciprocal).
    ref_out, ref_attn = ref_fwd(q, k, v)
    out, attn = mha(q, k, v, wq_t, wk_t, wv_t, wfc_t, gamma, beta,
                    compute_dtype=jnp.float32, return_attn=True)
    jax.block_until_ready((out, attn))
    assert out.shape == (b, seq, d_model) and attn.shape == (n_head * b, seq, seq)
    assert jnp.allclose(out, ref_out, atol=1e-4, rtol=1e-4)
    assert jnp.allclose(attn, ref_attn, atol=1e-4, rtol=1e-4)

    # 2) Default performance config: bf16 MXU operands + bf16 streaming,
    #    approximate (EUP) softmax reciprocal, no attention-map writeback.
    out_bf = mha(q, k, v, wq_t, wk_t, wv_t, wfc_t, gamma, beta)
    jax.block_until_ready(out_bf)
    assert jnp.allclose(out_bf, ref_out, atol=1e-1, rtol=1e-1)

    # 3) Boolean attn_mask (masked_fill -1e6) path, strict f32.
    causal = jnp.triu(jnp.ones((seq, seq), dtype=bool), k=1)
    mask = jnp.broadcast_to(causal, (b, seq, seq))
    ref_out_m, ref_attn_m = ref_fwd(q, k, v, mask)
    out_m, attn_m = mha(q, k, v, wq_t, wk_t, wv_t, wfc_t, gamma, beta,
                        attn_mask=mask, compute_dtype=jnp.float32,
                        return_attn=True)
    jax.block_until_ready((out_m, attn_m))
    assert jnp.allclose(out_m, ref_out_m, atol=1e-4, rtol=1e-4)
    assert jnp.allclose(attn_m, ref_attn_m, atol=1e-4, rtol=1e-4)

    # 4) Self-attention fast path (q is k is v): fused QKV weight, one input.
    ref_out_s, _ = ref_fwd(q, q, q)
    out_s = mha(q, q, q, wq_t, wk_t, wv_t, wfc_t, gamma, beta,
                compute_dtype=jnp.float32, approx_softmax=False)
    jax.block_until_ready(out_s)
    assert jnp.allclose(out_s, ref_out_s, atol=1e-4, rtol=1e-4)

    print("KERNEL_OK")
</pallas_src>

<mosaic_0001>
module attributes {stable_mosaic.version = 11 : i64} {
  func.func @_mha_kernel(%arg0: i32, %arg1: memref<8x32xf32, #tpu.memory_space<vmem>>, %arg2: memref<8x32xf32, #tpu.memory_space<vmem>>, %arg3: memref<8x32xf32, #tpu.memory_space<vmem>>, %arg4: memref<32x32xf32, #tpu.memory_space<vmem>>, %arg5: memref<32x32xf32, #tpu.memory_space<vmem>>, %arg6: memref<32x32xf32, #tpu.memory_space<vmem>>, %arg7: memref<32x32xf32, #tpu.memory_space<vmem>>, %arg8: memref<1x32xf32, #tpu.memory_space<vmem>>, %arg9: memref<1x32xf32, #tpu.memory_space<vmem>>, %arg10: memref<8x32xf32, #tpu.memory_space<vmem>>, %arg11: memref<4x8x8xf32, #tpu.memory_space<vmem>>) attributes {dimension_semantics = [#tpu.dimension_semantics<parallel>], iteration_bounds = array<i64: 2>, scalar_prefetch = 0 : i64, scratch_operands = 0 : i64, tpu.core_type = #tpu.core_type<tc>, window_params = [{transform_indices = @transform_0, window_bounds = array<i64: 8, 32>}, {transform_indices = @transform_1, window_bounds = array<i64: 8, 32>}, {transform_indices = @transform_2, window_bounds = array<i64: 8, 32>}, {pipeline_mode = #tpu.pipeline_mode<synchronous>, transform_indices = @transform_3, window_bounds = array<i64: 32, 32>}, {pipeline_mode = #tpu.pipeline_mode<synchronous>, transform_indices = @transform_4, window_bounds = array<i64: 32, 32>}, {pipeline_mode = #tpu.pipeline_mode<synchronous>, transform_indices = @transform_5, window_bounds = array<i64: 32, 32>}, {pipeline_mode = #tpu.pipeline_mode<synchronous>, transform_indices = @transform_6, window_bounds = array<i64: 32, 32>}, {pipeline_mode = #tpu.pipeline_mode<synchronous>, transform_indices = @transform_7, window_bounds = array<i64: 1, 32>}, {pipeline_mode = #tpu.pipeline_mode<synchronous>, transform_indices = @transform_8, window_bounds = array<i64: 1, 32>}, {transform_indices = @transform_9, window_bounds = array<i64: 8, 32>}, {transform_indices = @transform_10, window_bounds = array<i64: 4, 8, 8>}]} {
    %c0 = arith.constant 0 : index
    %c0_0 = arith.constant 0 : index
    %0 = vector.load %arg1[%c0, %c0_0] : memref<8x32xf32, #tpu.memory_space<vmem>>, vector<8x32xf32>
    %c0_1 = arith.constant 0 : index
    %c0_2 = arith.constant 0 : index
    %1 = vector.load %arg4[%c0_1, %c0_2] : memref<32x32xf32, #tpu.memory_space<vmem>>, vector<32x32xf32>
    %cst = arith.constant dense<0.000000e+00> : vector<8x32xf32>
    %2 = tpu.matmul %0, %1, %cst {dimension_numbers = #tpu.dot_dimension_numbers<[1], [0], [0], [1], [0, 0, 1, 1], [], []>} : vector<8x32xf32>, vector<32x32xf32>, vector<8x32xf32> -> vector<8x32xf32>
    %c0_3 = arith.constant 0 : index
    %c0_4 = arith.constant 0 : index
    %3 = vector.load %arg2[%c0_3, %c0_4] : memref<8x32xf32, #tpu.memory_space<vmem>>, vector<8x32xf32>
    %c0_5 = arith.constant 0 : index
    %c0_6 = arith.constant 0 : index
    %4 = vector.load %arg5[%c0_5, %c0_6] : memref<32x32xf32, #tpu.memory_space<vmem>>, vector<32x32xf32>
    %cst_7 = arith.constant dense<0.000000e+00> : vector<8x32xf32>
    %5 = tpu.matmul %3, %4, %cst_7 {dimension_numbers = #tpu.dot_dimension_numbers<[1], [0], [0], [1], [0, 0, 1, 1], [], []>} : vector<8x32xf32>, vector<32x32xf32>, vector<8x32xf32> -> vector<8x32xf32>
    %c0_8 = arith.constant 0 : index
    %c0_9 = arith.constant 0 : index
    %6 = vector.load %arg3[%c0_8, %c0_9] : memref<8x32xf32, #tpu.memory_space<vmem>>, vector<8x32xf32>
    %c0_10 = arith.constant 0 : index
    %c0_11 = arith.constant 0 : index
    %7 = vector.load %arg6[%c0_10, %c0_11] : memref<32x32xf32, #tpu.memory_space<vmem>>, vector<32x32xf32>
    %cst_12 = arith.constant dense<0.000000e+00> : vector<8x32xf32>
    %8 = tpu.matmul %6, %7, %cst_12 {dimension_numbers = #tpu.dot_dimension_numbers<[1], [0], [0], [1], [0, 0, 1, 1], [], []>} : vector<8x32xf32>, vector<32x32xf32>, vector<8x32xf32> -> vector<8x32xf32>
    %9 = vector.shape_cast %2 : vector<8x32xf32> to vector<1x8x4x8xf32>
    %10 = tpu.transpose %9, [0, 2, 1, 3] : vector<1x8x4x8xf32> -> vector<1x4x8x8xf32>
    %11 = vector.shape_cast %10 : vector<1x4x8x8xf32> to vector<4x8x8xf32>
    %12 = vector.shape_cast %5 : vector<8x32xf32> to vector<1x8x4x8xf32>
    %13 = tpu.transpose %12, [0, 2, 1, 3] : vector<1x8x4x8xf32> -> vector<1x4x8x8xf32>
    %14 = vector.shape_cast %13 : vector<1x4x8x8xf32> to vector<4x8x8xf32>
    %15 = vector.shape_cast %8 : vector<8x32xf32> to vector<1x8x4x8xf32>
    %16 = tpu.transpose %15, [0, 2, 1, 3] : vector<1x8x4x8xf32> -> vector<1x4x8x8xf32>
    %17 = vector.shape_cast %16 : vector<1x4x8x8xf32> to vector<4x8x8xf32>
    "tpu.trace_start"() <{level = 10 : i32, message = "bqd,bkd->bqk"}> : () -> ()
    %cst_13 = arith.constant dense<0.000000e+00> : vector<4x8x8xf32>
    %18 = tpu.matmul %11, %14, %cst_13 {dimension_numbers = #tpu.dot_dimension_numbers<[2], [2], [1], [1], [0, 0, 0, 1, 1, 1], [0], [0]>} : vector<4x8x8xf32>, vector<4x8x8xf32>, vector<4x8x8xf32> -> vector<4x8x8xf32>
    "tpu.trace_stop"() : () -> ()
    %cst_14 = arith.constant 0.353553385 : f32
    %19 = vector.broadcast %cst_14 : f32 to vector<4x8x8xf32>
    %20 = arith.mulf %18, %19 : vector<4x8x8xf32>
    %cst_15 = arith.constant dense<0xFF800000> : vector<4x8xf32>
    %21 = vector.multi_reduction <maximumf>, %20, %cst_15 [2] : vector<4x8x8xf32> to vector<4x8xf32>
    %22 = vector.shape_cast %21 : vector<4x8xf32> to vector<4x8x1xf32>
    %23 = vector.broadcast %22 : vector<4x8x1xf32> to vector<4x8x8xf32>
    %24 = arith.subf %20, %23 : vector<4x8x8xf32>
    %25 = math.exp %24 : vector<4x8x8xf32>
    %cst_16 = arith.constant dense<0.000000e+00> : vector<4x8xf32>
    %26 = vector.multi_reduction <add>, %25, %cst_16 [2] : vector<4x8x8xf32> to vector<4x8xf32>
    %27 = vector.shape_cast %26 : vector<4x8xf32> to vector<4x8x1xf32>
    %28 = tpu.reciprocal %27 : vector<4x8x1xf32> -> vector<4x8x1xf32>
    %29 = vector.broadcast %28 : vector<4x8x1xf32> to vector<4x8x8xf32>
    %30 = arith.mulf %25, %29 : vector<4x8x8xf32>
    %c0_17 = arith.constant 0 : index
    %c0_18 = arith.constant 0 : index
    %c0_19 = arith.constant 0 : index
    %31 = vector.load %arg11[%c0_17, %c0_18, %c0_19] : memref<4x8x8xf32, #tpu.memory_space<vmem>>, vector<4x8x8xf32>
    tpu.vector_store %arg11[%c0_17, %c0_18, %c0_19], %30 {strides = array<i32>} : memref<4x8x8xf32, #tpu.memory_space<vmem>>, vector<4x8x8xf32>,
    "tpu.trace_start"() <{level = 10 : i32, message = "bqk,bkd->bqd"}> : () -> ()
    %cst_20 = arith.constant dense<0.000000e+00> : vector<4x8x8xf32>
    %32 = tpu.matmul %30, %17, %cst_20 {dimension_numbers = #tpu.dot_dimension_numbers<[2], [1], [1], [2], [0, 0, 0, 1, 1, 2], [0], [0]>} : vector<4x8x8xf32>, vector<4x8x8xf32>, vector<4x8x8xf32> -> vector<4x8x8xf32>
    "tpu.trace_stop"() : () -> ()
    %33 = vector.shape_cast %32 : vector<4x8x8xf32> to vector<1x4x8x8xf32>
    %34 = tpu.transpose %33, [0, 2, 1, 3] : vector<1x4x8x8xf32> -> vector<1x8x4x8xf32>
    %35 = vector.shape_cast %34 : vector<1x8x4x8xf32> to vector<8x32xf32>
    %c0_21 = arith.constant 0 : index
    %c0_22 = arith.constant 0 : index
    %36 = vector.load %arg7[%c0_21, %c0_22] : memref<32x32xf32, #tpu.memory_space<vmem>>, vector<32x32xf32>
    %cst_23 = arith.constant dense<0.000000e+00> : vector<8x32xf32>
    %37 = tpu.matmul %35, %36, %cst_23 {dimension_numbers = #tpu.dot_dimension_numbers<[1], [0], [0], [1], [0, 0, 1, 1], [], []>} : vector<8x32xf32>, vector<32x32xf32>, vector<8x32xf32> -> vector<8x32xf32>
    %38 = arith.addf %37, %0 : vector<8x32xf32>
    %cst_24 = arith.constant dense<0.000000e+00> : vector<8xf32>
    %39 = vector.multi_reduction <add>, %38, %cst_24 [1] : vector<8x32xf32> to vector<8xf32>
    %40 = vector.shape_cast %39 : vector<8xf32> to vector<8x1xf32>
    %cst_25 = arith.constant 3.200000e+01 : f32
    %41 = vector.broadcast %cst_25 : f32 to vector<8x1xf32>
    %42 = arith.divf %40, %41 : vector<8x1xf32>
    %43 = arith.mulf %38, %38 : vector<8x32xf32>
    %cst_26 = arith.constant dense<0.000000e+00> : vector<8xf32>
    %44 = vector.multi_reduction <add>, %43, %cst_26 [1] : vector<8x32xf32> to vector<8xf32>
    %45 = vector.shape_cast %44 : vector<8xf32> to vector<8x1xf32>
    %cst_27 = arith.constant 3.200000e+01 : f32
    %46 = vector.broadcast %cst_27 : f32 to vector<8x1xf32>
    %47 = arith.divf %45, %46 : vector<8x1xf32>
    %48 = arith.mulf %42, %42 : vector<8x1xf32>
    %49 = arith.subf %47, %48 : vector<8x1xf32>
    %50 = vector.broadcast %42 : vector<8x1xf32> to vector<8x32xf32>
    %51 = arith.subf %38, %50 : vector<8x32xf32>
    %cst_28 = arith.constant 9.99999974E-6 : f32
    %52 = vector.broadcast %cst_28 : f32 to vector<8x1xf32>
    %53 = arith.addf %49, %52 : vector<8x1xf32>
    %54 = math.rsqrt %53 : vector<8x1xf32>
    %55 = vector.broadcast %54 : vector<8x1xf32> to vector<8x32xf32>
    %56 = arith.mulf %51, %55 : vector<8x32xf32>
    %c0_29 = arith.constant 0 : index
    %c0_30 = arith.constant 0 : index
    %57 = vector.load %arg8[%c0_29, %c0_30] : memref<1x32xf32, #tpu.memory_space<vmem>>, vector<1x32xf32>
    %58 = vector.broadcast %57 : vector<1x32xf32> to vector<8x32xf32>
    %59 = arith.mulf %56, %58 : vector<8x32xf32>
    %c0_31 = arith.constant 0 : index
    %c0_32 = arith.constant 0 : index
    %60 = vector.load %arg9[%c0_31, %c0_32] : memref<1x32xf32, #tpu.memory_space<vmem>>, vector<1x32xf32>
    %61 = vector.broadcast %60 : vector<1x32xf32> to vector<8x32xf32>
    %62 = arith.addf %59, %61 : vector<8x32xf32>
    %c0_33 = arith.constant 0 : index
    %c0_34 = arith.constant 0 : index
    %63 = vector.load %arg10[%c0_33, %c0_34] : memref<8x32xf32, #tpu.memory_space<vmem>>, vector<8x32xf32>
    tpu.vector_store %arg10[%c0_33, %c0_34], %62 {strides = array<i32>} : memref<8x32xf32, #tpu.memory_space<vmem>>, vector<8x32xf32>,
    return
  }
  func.func @transform_0(%arg0: i32) -> (i32, i32) {
    %c0_i32 = arith.constant 0 : i32
    %c0_i32_0 = arith.constant 0 : i32
    return %arg0, %c0_i32 : i32, i32
  }
  func.func @transform_1(%arg0: i32) -> (i32, i32) {
    %c0_i32 = arith.constant 0 : i32
    %c0_i32_0 = arith.constant 0 : i32
    return %arg0, %c0_i32 : i32, i32
  }
  func.func @transform_2(%arg0: i32) -> (i32, i32) {
    %c0_i32 = arith.constant 0 : i32
    %c0_i32_0 = arith.constant 0 : i32
    return %arg0, %c0_i32 : i32, i32
  }
  func.func @transform_3(%arg0: i32) -> (i32, i32) {
    %c0_i32 = arith.constant 0 : i32
    %c0_i32_0 = arith.constant 0 : i32
    %c0_i32_1 = arith.constant 0 : i32
    return %c0_i32, %c0_i32_0 : i32, i32
  }
  func.func @transform_4(%arg0: i32) -> (i32, i32) {
    %c0_i32 = arith.constant 0 : i32
    %c0_i32_0 = arith.constant 0 : i32
    %c0_i32_1 = arith.constant 0 : i32
    return %c0_i32, %c0_i32_0 : i32, i32
  }
  func.func @transform_5(%arg0: i32) -> (i32, i32) {
    %c0_i32 = arith.constant 0 : i32
    %c0_i32_0 = arith.constant 0 : i32
    %c0_i32_1 = arith.constant 0 : i32
    return %c0_i32, %c0_i32_0 : i32, i32
  }
  func.func @transform_6(%arg0: i32) -> (i32, i32) {
    %c0_i32 = arith.constant 0 : i32
    %c0_i32_0 = arith.constant 0 : i32
    %c0_i32_1 = arith.constant 0 : i32
    return %c0_i32, %c0_i32_0 : i32, i32
  }
  func.func @transform_7(%arg0: i32) -> (i32, i32) {
    %c0_i32 = arith.constant 0 : i32
    %c0_i32_0 = arith.constant 0 : i32
    %c0_i32_1 = arith.constant 0 : i32
    return %c0_i32, %c0_i32_0 : i32, i32
  }
  func.func @transform_8(%arg0: i32) -> (i32, i32) {
    %c0_i32 = arith.constant 0 : i32
    %c0_i32_0 = arith.constant 0 : i32
    %c0_i32_1 = arith.constant 0 : i32
    return %c0_i32, %c0_i32_0 : i32, i32
  }
  func.func @transform_9(%arg0: i32) -> (i32, i32) {
    %c0_i32 = arith.constant 0 : i32
    %c0_i32_0 = arith.constant 0 : i32
    return %arg0, %c0_i32 : i32, i32
  }
  func.func @transform_10(%arg0: i32) -> (i32, i32, i32) {
    %c0_i32 = arith.constant 0 : i32
    %c0_i32_0 = arith.constant 0 : i32
    %c0_i32_1 = arith.constant 0 : i32
    return %arg0, %c0_i32, %c0_i32_0 : i32, i32, i32
  }
}

</mosaic_0001>

<llo_original>
// kernel: tpu_custom_call.1
$region0: #{tpu_custom_call.1}
  #allocation0 [shape = 'u32[]', space=smem, size = 0x4, offset = 0x4, fixed_abs, tag = 'smem constant byte address 0x4 - core index']
  #allocation1 [shape = 'u32[72,128]{1,0:T(1,128)}', space=vmem, size = 0x9000, scoped, tag = 'internal scratch']
  %s0 = inlined_call_operand.hbm [shape: f32[16,32], index: 0, kind: input, shape index: {}]
  %s1 = inlined_call_operand.hbm [shape: f32[16,32], index: 1, kind: input, shape index: {}]
  %s2 = inlined_call_operand.hbm [shape: f32[16,32], index: 2, kind: input, shape index: {}]
  %s3 = inlined_call_operand.hbm [shape: f32[32,32], index: 3, kind: input, shape index: {}]
  %s4 = inlined_call_operand.hbm [shape: f32[32,32], index: 4, kind: input, shape index: {}]
  %s5 = inlined_call_operand.hbm [shape: f32[32,32], index: 5, kind: input, shape index: {}]
  %s6 = inlined_call_operand.hbm [shape: f32[32,32], index: 6, kind: input, shape index: {}]
  %s7 = inlined_call_operand.vmem [shape: f32[1,32], index: 7, kind: input, shape index: {}]
  %s8 = inlined_call_operand.vmem [shape: f32[1,32], index: 8, kind: input, shape index: {}]
  %s9 = inlined_call_operand.hbm [shape: f32[16,32], index: 9, kind: output, shape index: {0}]
  %s10 = inlined_call_operand.hbm [shape: f32[8,8,8], index: 10, kind: output, shape index: {1}]
  %11 = xla_tuple %s9, %s10
  %s12 = sld [smem:[#allocation0]]
  $region105: #{tpu_custom_call.1} parent=0
    _
  %s14 = ssub.s32 1, %s12
  %s15 = scalar_select 0, %s14, %s12
  $region1: #{tpu_custom_call.1} parent=0
    #allocation2 [shape = 'u8[8192]{0}', space=vmem, size = 0x2000, scoped, tag = 'input window, operand 0']
    #allocation3 [shape = 's32[2]{0}', space=sflag, size = 0x8, scoped, tag = 'scoped memory for tpu_custom_call.1']
    #allocation4 [shape = 's32[2]{0}', space=sflag, size = 0x8, scoped, tag = 'scoped memory for tpu_custom_call.1']
    #allocation5 [shape = 'u8[8192]{0}', space=vmem, size = 0x2000, scoped, tag = 'input window, operand 1']
    #allocation6 [shape = 's32[2]{0}', space=sflag, size = 0x8, scoped, tag = 'scoped memory for tpu_custom_call.1']
    #allocation7 [shape = 'u8[8192]{0}', space=vmem, size = 0x2000, scoped, tag = 'input window, operand 2']
    #allocation8 [shape = 'u8[16384]{0}', space=vmem, size = 0x4000, scoped, tag = 'input window, operand 3, single buffered']
    #allocation9 [shape = 's32[1]{0}', space=sflag, size = 0x4, scoped, tag = 'scoped memory for tpu_custom_call.1']
    #allocation10 [shape = 'u8[16384]{0}', space=vmem, size = 0x4000, scoped, tag = 'input window, operand 4, single buffered']
    #allocation11 [shape = 'u8[16384]{0}', space=vmem, size = 0x4000, scoped, tag = 'input window, operand 5, single buffered']
    #allocation12 [shape = 's32[1]{0}', space=sflag, size = 0x4, scoped, tag = 'scoped memory for tpu_custom_call.1']
    #allocation13 [shape = 'u8[16384]{0}', space=vmem, size = 0x4000, scoped, tag = 'input window, operand 6, single buffered']
    #allocation14 [shape = 'u8[8192]{0}', space=vmem, size = 0x2000, scoped, tag = 'output window, operand 0']
    #allocation15 [shape = 'u8[32768]{0}', space=vmem, size = 0x8000, scoped, tag = 'output window, operand 1']
    #allocation16 [shape = 's32[2]{0}', space=sflag, size = 0x8, scoped, tag = 'scoped memory for tpu_custom_call.1']
    %16 = vsyncpa [#allocation3], 0
    %s17 = scalar_lea.sflag [#allocation3], 1
    %18 = vsyncpa %s17, 0
    %19 = vsyncpa [#allocation6], 0
    %s20 = scalar_lea.sflag [#allocation6], 1
    %21 = vsyncpa %s20, 0
    %22 = vsyncpa [#allocation9], 0
    %23 = vsyncpa [#allocation12], 0
    %24 = vsyncpa [#allocation4], 0
    %s25 = scalar_lea.sflag [#allocation4], 1
    %26 = vsyncpa %s25, 0
    %27 = vsyncpa [#allocation16], 0
    %s28 = scalar_lea.sflag [#allocation16], 1
    %29 = vsyncpa %s28, 0
    loop: start=0, step=1, limit=4
    $region2: #{tpu_custom_call.1} parent=1 // loop_pre_header
      _
    $region3: #{tpu_custom_call.1} parent=1 // loop_header
      %s31 = sphi 0, %s35
      %p32 = scmp.ge.s32.totalorder %s31, 4
      %s41 = sphi 0, %s43
      %s44 = sphi 0, %s41
      %s45 = sphi 0, %s44
      %s61 = sphi 0, %s45
      %s67 = sphi 0, %s69
      %s70 = sphi 0, %s67
      %s71 = sphi 0, %s70
      %s87 = sphi 0, %s71
      %s93 = sphi 0, %s95
      %s96 = sphi 0, %s93
      %s97 = sphi 0, %s96
      %s113 = sphi 0, %s97
      %s117 = sphi 0, %s117
      %s119 = sphi 0, %s117
      %s120 = sphi 0, %s119
      %s134 = sphi 0, %s120
      %s138 = sphi 0, %s138
      %s140 = sphi 0, %s138
      %s141 = sphi 0, %s140
      %s155 = sphi 0, %s141
      %s159 = sphi 0, %s159
      %s161 = sphi 0, %s159
      %s162 = sphi 0, %s161
      %s176 = sphi 0, %s162
      %s180 = sphi 0, %s180
      %s182 = sphi 0, %s180
      %s183 = sphi 0, %s182
      %s197 = sphi 0, %s183
      %s201 = sphi 0, %s201
      %s203 = sphi 0, %s201
      %s204 = sphi 0, %s203
      %s218 = sphi 0, %s204
      %s222 = sphi 0, %s222
      %s224 = sphi 0, %s222
      %s225 = sphi 0, %s224
      %s239 = sphi 0, %s225
      %s245 = sphi 0, %s247
      %s248 = sphi 0, %s245
      %s249 = sphi 0, %s248
      %s265 = sphi 0, %s249
      %s271 = sphi 0, %s273
      %s274 = sphi 0, %s271
      %s275 = sphi 0, %s274
      %s291 = sphi 0, %s275
    $region4: #{tpu_custom_call.1} parent=1 // loop_header_branch
      %34 = sbr.rel (%p32) target = $region8
    $region5: #{tpu_custom_call.1} parent=1 // loop_body
      %s36 = ssub.s32 %s31, 1
      %s37 = ssub.s32 %s31, 2
      %s38 = sadd.s32 %s31, 1
      %s39 = ssub.s32 %s31, %s38
      %p40 = scmp.eq.s32.totalorder %s39, 0
      %s42 = sadd.s32 %s41, 1
      %s43 = scalar_select %p40, %s41, %s42
      %p46 = pneg %p40
      %p47 = scmp.eq.s32.totalorder %s31, 1
      %p48 = por %p46, %p47
      %p49 = scmp.ne.s32.totalorder %s41, %s44
      %p50 = scmp.eq.s32.totalorder %s31, 0
      %p51 = por %p49, %p50
      %p52 = scmp.ne.s32.totalorder %s41, %s44
      %p53 = scmp.eq.s32.totalorder %s36, 1
      %p54 = por %p52, %p53
      %p55 = scmp.ne.s32.totalorder %s44, %s45
      %p56 = scmp.eq.s32.totalorder %s36, 0
      %p57 = por %p55, %p56
      %p58 = scmp.ne.s32.totalorder %s44, %s45
      %p59 = scmp.eq.s32.totalorder %s37, 1
      %p60 = por %p58, %p59
      %p62 = scmp.ne.s32.totalorder %s45, %s61
      %p63 = scmp.eq.s32.totalorder %s37, 0
      %p64 = por %p62, %p63
      %s65 = ssub.s32 %s31, %s38
      %p66 = scmp.eq.s32.totalorder %s65, 0
      %s68 = sadd.s32 %s67, 1
      %s69 = scalar_select %p66, %s67, %s68
      %p72 = pneg %p66
      %p73 = scmp.eq.s32.totalorder %s31, 1
      %p74 = por %p72, %p73
      %p75 = scmp.ne.s32.totalorder %s67, %s70
      %p76 = scmp.eq.s32.totalorder %s31, 0
      %p77 = por %p75, %p76
      %p78 = scmp.ne.s32.totalorder %s67, %s70
      %p79 = scmp.eq.s32.totalorder %s36, 1
      %p80 = por %p78, %p79
      %p81 = scmp.ne.s32.totalorder %s70, %s71
      %p82 = scmp.eq.s32.totalorder %s36, 0
      %p83 = por %p81, %p82
      %p84 = scmp.ne.s32.totalorder %s70, %s71
      %p85 = scmp.eq.s32.totalorder %s37, 1
      %p86 = por %p84, %p85
      %p88 = scmp.ne.s32.totalorder %s71, %s87
      %p89 = scmp.eq.s32.totalorder %s37, 0
      %p90 = por %p88, %p89
      %s91 = ssub.s32 %s31, %s38
      %p92 = scmp.eq.s32.totalorder %s91, 0
      %s94 = sadd.s32 %s93, 1
      %s95 = scalar_select %p92, %s93, %s94
      %p98 = pneg %p92
      %p99 = scmp.eq.s32.totalorder %s31, 1
      %p100 = por %p98, %p99
      %p101 = scmp.ne.s32.totalorder %s93, %s96
      %p102 = scmp.eq.s32.totalorder %s31, 0
      %p103 = por %p101, %p102
      %p104 = scmp.ne.s32.totalorder %s93, %s96
      %p105 = scmp.eq.s32.totalorder %s36, 1
      %p106 = por %p104, %p105
      %p107 = scmp.ne.s32.totalorder %s96, %s97
      %p108 = scmp.eq.s32.totalorder %s36, 0
      %p109 = por %p107, %p108
      %p110 = scmp.ne.s32.totalorder %s96, %s97
      %p111 = scmp.eq.s32.totalorder %s37, 1
      %p112 = por %p110, %p111
      %p114 = scmp.ne.s32.totalorder %s97, %s113
      %p115 = scmp.eq.s32.totalorder %s37, 0
      %p116 = por %p114, %p115
      %s118 = sadd.s32 %s117, 1
      %p121 = scmp.eq.s32.totalorder %s31, 1
      %p122 = scmp.ne.s32.totalorder %s117, %s119
      %p123 = scmp.eq.s32.totalorder %s31, 0
      %p124 = por %p122, %p123
      %p125 = scmp.ne.s32.totalorder %s117, %s119
      %p126 = scmp.eq.s32.totalorder %s36, 1
      %p127 = por %p125, %p126
      %p128 = scmp.ne.s32.totalorder %s119, %s120
      %p129 = scmp.eq.s32.totalorder %s36, 0
      %p130 = por %p128, %p129
      %p131 = scmp.ne.s32.totalorder %s119, %s120
      %p132 = scmp.eq.s32.totalorder %s37, 1
      %p133 = por %p131, %p132
      %p135 = scmp.ne.s32.totalorder %s120, %s134
      %p136 = scmp.eq.s32.totalorder %s37, 0
      %p137 = por %p135, %p136
      %s139 = sadd.s32 %s138, 1
      %p142 = scmp.eq.s32.totalorder %s31, 1
      %p143 = scmp.ne.s32.totalorder %s138, %s140
      %p144 = scmp.eq.s32.totalorder %s31, 0
      %p145 = por %p143, %p144
      %p146 = scmp.ne.s32.totalorder %s138, %s140
      %p147 = scmp.eq.s32.totalorder %s36, 1
      %p148 = por %p146, %p147
      %p149 = scmp.ne.s32.totalorder %s140, %s141
      %p150 = scmp.eq.s32.totalorder %s36, 0
      %p151 = por %p149, %p150
      %p152 = scmp.ne.s32.totalorder %s140, %s141
      %p153 = scmp.eq.s32.totalorder %s37, 1
      %p154 = por %p152, %p153
      %p156 = scmp.ne.s32.totalorder %s141, %s155
      %p157 = scmp.eq.s32.totalorder %s37, 0
      %p158 = por %p156, %p157
      %s160 = sadd.s32 %s159, 1
      %p163 = scmp.eq.s32.totalorder %s31, 1
      %p164 = scmp.ne.s32.totalorder %s159, %s161
      %p165 = scmp.eq.s32.totalorder %s31, 0
      %p166 = por %p164, %p165
      %p167 = scmp.ne.s32.totalorder %s159, %s161
      %p168 = scmp.eq.s32.totalorder %s36, 1
      %p169 = por %p167, %p168
      %p170 = scmp.ne.s32.totalorder %s161, %s162
      %p171 = scmp.eq.s32.totalorder %s36, 0
      %p172 = por %p170, %p171
      %p173 = scmp.ne.s32.totalorder %s161, %s162
      %p174 = scmp.eq.s32.totalorder %s37, 1
      %p175 = por %p173, %p174
      %p177 = scmp.ne.s32.totalorder %s162, %s176
      %p178 = scmp.eq.s32.totalorder %s37, 0
      %p179 = por %p177, %p178
      %s181 = sadd.s32 %s180, 1
      %p184 = scmp.eq.s32.totalorder %s31, 1
      %p185 = scmp.ne.s32.totalorder %s180, %s182
      %p186 = scmp.eq.s32.totalorder %s31, 0
      %p187 = por %p185, %p186
      %p188 = scmp.ne.s32.totalorder %s180, %s182
      %p189 = scmp.eq.s32.totalorder %s36, 1
      %p190 = por %p188, %p189
      %p191 = scmp.ne.s32.totalorder %s182, %s183
      %p192 = scmp.eq.s32.totalorder %s36, 0
      %p193 = por %p191, %p192
      %p194 = scmp.ne.s32.totalorder %s182, %s183
      %p195 = scmp.eq.s32.totalorder %s37, 1
      %p196 = por %p194, %p195
      %p198 = scmp.ne.s32.totalorder %s183, %s197
      %p199 = scmp.eq.s32.totalorder %s37, 0
      %p200 = por %p198, %p199
      %s202 = sadd.s32 %s201, 1
      %p205 = scmp.eq.s32.totalorder %s31, 1
      %p206 = scmp.ne.s32.totalorder %s201, %s203
      %p207 = scmp.eq.s32.totalorder %s31, 0
      %p208 = por %p206, %p207
      %p209 = scmp.ne.s32.totalorder %s201, %s203
      %p210 = scmp.eq.s32.totalorder %s36, 1
      %p211 = por %p209, %p210
      %p212 = scmp.ne.s32.totalorder %s203, %s204
      %p213 = scmp.eq.s32.totalorder %s36, 0
      %p214 = por %p212, %p213
      %p215 = scmp.ne.s32.totalorder %s203, %s204
      %p216 = scmp.eq.s32.totalorder %s37, 1
      %p217 = por %p215, %p216
      %p219 = scmp.ne.s32.totalorder %s204, %s218
      %p220 = scmp.eq.s32.totalorder %s37, 0
      %p221 = por %p219, %p220
      %s223 = sadd.s32 %s222, 1
      %p226 = scmp.eq.s32.totalorder %s31, 1
      %p227 = scmp.ne.s32.totalorder %s222, %s224
      %p228 = scmp.eq.s32.totalorder %s31, 0
      %p229 = por %p227, %p228
      %p230 = scmp.ne.s32.totalorder %s222, %s224
      %p231 = scmp.eq.s32.totalorder %s36, 1
      %p232 = por %p230, %p231
      %p233 = scmp.ne.s32.totalorder %s224, %s225
      %p234 = scmp.eq.s32.totalorder %s36, 0
      %p235 = por %p233, %p234
      %p236 = scmp.ne.s32.totalorder %s224, %s225
      %p237 = scmp.eq.s32.totalorder %s37, 1
      %p238 = por %p236, %p237
      %p240 = scmp.ne.s32.totalorder %s225, %s239
      %p241 = scmp.eq.s32.totalorder %s37, 0
      %p242 = por %p240, %p241
      %s243 = ssub.s32 %s31, %s38
      %p244 = scmp.eq.s32.totalorder %s243, 0
      %s246 = sadd.s32 %s245, 1
      %s247 = scalar_select %p244, %s245, %s246
      %p250 = pneg %p244
      %p251 = scmp.eq.s32.totalorder %s31, 1
      %p252 = por %p250, %p251
      %p253 = scmp.ne.s32.totalorder %s245, %s248
      %p254 = scmp.eq.s32.totalorder %s31, 0
      %p255 = por %p253, %p254
      %p256 = scmp.ne.s32.totalorder %s245, %s248
      %p257 = scmp.eq.s32.totalorder %s36, 1
      %p258 = por %p256, %p257
      %p259 = scmp.ne.s32.totalorder %s248, %s249
      %p260 = scmp.eq.s32.totalorder %s36, 0
      %p261 = por %p259, %p260
      %p262 = scmp.ne.s32.totalorder %s248, %s249
      %p263 = scmp.eq.s32.totalorder %s37, 1
      %p264 = por %p262, %p263
      %p266 = scmp.ne.s32.totalorder %s249, %s265
      %p267 = scmp.eq.s32.totalorder %s37, 0
      %p268 = por %p266, %p267
      %s269 = ssub.s32 %s31, %s38
      %p270 = scmp.eq.s32.totalorder %s269, 0
      %s272 = sadd.s32 %s271, 1
      %s273 = scalar_select %p270, %s271, %s272
      %p276 = pneg %p270
      %p277 = scmp.eq.s32.totalorder %s31, 1
      %p278 = por %p276, %p277
      %p279 = scmp.ne.s32.totalorder %s271, %s274
      %p280 = scmp.eq.s32.totalorder %s31, 0
      %p281 = por %p279, %p280
      %p282 = scmp.ne.s32.totalorder %s271, %s274
      %p283 = scmp.eq.s32.totalorder %s36, 1
      %p284 = por %p282, %p283
      %p285 = scmp.ne.s32.totalorder %s274, %s275
      %p286 = scmp.eq.s32.totalorder %s36, 0
      %p287 = por %p285, %p286
      %p288 = scmp.ne.s32.totalorder %s274, %s275
      %p289 = scmp.eq.s32.totalorder %s37, 1
      %p290 = por %p288, %p289
      %p292 = scmp.ne.s32.totalorder %s275, %s291
      %p293 = scmp.eq.s32.totalorder %s37, 0
      %p294 = por %p292, %p293
      %p295 = scmp.le.s32.totalorder 1, %s31
      %p296 = scmp.lt.s32.totalorder %s31, 3
      %p297 = pnand %p295, %p296
      %p298 = pneg %p297
      // Predicated region
      $region9: #{tpu_custom_call.1} parent=5 // pred_check
        _
      $region10: #{tpu_custom_call.1} parent=5 // pred_check_branch
        %300 = sbr.rel (%p297) target = $region12
      $region11: #{tpu_custom_call.1} parent=5 // pred_region
        %s301 = ssub.s32 %s31, 1
        // Predicated region
        $region13: #{tpu_custom_call.1} parent=11 // pred_check
          %p302 = pneg %p130
        $region14: #{tpu_custom_call.1} parent=11 // pred_check_branch
          %304 = sbr.rel (%p302) target = $region16
        $region15: #{tpu_custom_call.1} parent=11 // pred_region
          %306 = vsyncadd [#allocation9], 0
          %s307 = sshll.u32 %s3, 4
          %s308 = int_to_ptr.hbm [resolvable:$true] %s307
          %s309 = sshll.u32 [#allocation8], 4
          %s310 = int_to_ptr.vmem [resolvable:$true] %s309
          %315 = dma.hbm_to_vmem [thread:$0]  %s308, 512, %s310, [#allocation9], 128, 128, 8
        $region16: #{tpu_custom_call.1} parent=11 // pred_fallthru
          _
        // Predicated region
        $region17: #{tpu_custom_call.1} parent=11 // pred_check
          %p316 = pneg %p151
        $region18: #{tpu_custom_call.1} parent=11 // pred_check_branch
          %318 = sbr.rel (%p316) target = $region20
        $region19: #{tpu_custom_call.1} parent=11 // pred_region
          %320 = vsyncadd [#allocation9], 0
          %s321 = sshll.u32 %s4, 4
          %s322 = int_to_ptr.hbm [resolvable:$true] %s321
          %s323 = sshll.u32 [#allocation10], 4
          %s324 = int_to_ptr.vmem [resolvable:$true] %s323
          %329 = dma.hbm_to_vmem [thread:$0]  %s322, 512, %s324, [#allocation9], 128, 128, 8
        $region20: #{tpu_custom_call.1} parent=11 // pred_fallthru
          _
        // Predicated region
        $region21: #{tpu_custom_call.1} parent=11 // pred_check
          %p330 = pneg %p172
        $region22: #{tpu_custom_call.1} parent=11 // pred_check_branch
          %332 = sbr.rel (%p330) target = $region24
        $region23: #{tpu_custom_call.1} parent=11 // pred_region
          %334 = vsyncadd [#allocation12], 0
          %s335 = sshll.u32 %s5, 4
          %s336 = int_to_ptr.hbm [resolvable:$true] %s335
          %s337 = sshll.u32 [#allocation11], 4
          %s338 = int_to_ptr.vmem [resolvable:$true] %s337
          %343 = dma.hbm_to_vmem [thread:$0]  %s336, 512, %s338, [#allocation12], 128, 128, 8
        $region24: #{tpu_custom_call.1} parent=11 // pred_fallthru
          _
        // Predicated region
        $region25: #{tpu_custom_call.1} parent=11 // pred_check
          %p344 = pneg %p193
        $region26: #{tpu_custom_call.1} parent=11 // pred_check_branch
          %346 = sbr.rel (%p344) target = $region28
        $region27: #{tpu_custom_call.1} parent=11 // pred_region
          %348 = vsyncadd [#allocation12], 0
          %s349 = sshll.u32 %s6, 4
          %s350 = int_to_ptr.hbm [resolvable:$true] %s349
          %s351 = sshll.u32 [#allocation13], 4
          %s352 = int_to_ptr.vmem [resolvable:$true] %s351
          %357 = dma.hbm_to_vmem [thread:$0]  %s350, 512, %s352, [#allocation12], 128, 128, 8
        $region28: #{tpu_custom_call.1} parent=11 // pred_fallthru
          _
        // Predicated region
        $region29: #{tpu_custom_call.1} parent=11 // pred_check
          %p358 = pneg %p214
        $region30: #{tpu_custom_call.1} parent=11 // pred_check_branch
          %360 = sbr.rel (%p358) target = $region32
        $region31: #{tpu_custom_call.1} parent=11 // pred_region
          _
        $region32: #{tpu_custom_call.1} parent=11 // pred_fallthru
          _
        // Predicated region
        $region33: #{tpu_custom_call.1} parent=11 // pred_check
          %p361 = pneg %p235
        $region34: #{tpu_custom_call.1} parent=11 // pred_check_branch
          %363 = sbr.rel (%p361) target = $region36
        $region35: #{tpu_custom_call.1} parent=11 // pred_region
          _
        $region36: #{tpu_custom_call.1} parent=11 // pred_fallthru
          _
      $region12: #{tpu_custom_call.1} parent=5 // pred_fallthru
        _
      %p364 = scmp.lt.s32.totalorder %s31, 2
      // Predicated region
      $region37: #{tpu_custom_call.1} parent=5 // pred_check
        %p365 = pneg %p364
      $region38: #{tpu_custom_call.1} parent=5 // pred_check_branch
        %367 = sbr.rel (%p365) target = $region40
      $region39: #{tpu_custom_call.1} parent=5 // pred_region
        // Predicated region
        $region41: #{tpu_custom_call.1} parent=39 // pred_check
          %p368 = pneg %p51
        $region42: #{tpu_custom_call.1} parent=39 // pred_check_branch
          %370 = sbr.rel (%p368) target = $region44
        $region43: #{tpu_custom_call.1} parent=39 // pred_region
          %s371 = sand.u32 %s41, 1
          %s372 = scalar_lea.sflag [#allocation3], %s371
          %s373 = sand.u32 %s41, 1
          %s374 = smul.addr %s373, 8
          %s375 = scalar_lea.vmem [#allocation2], %s374
          %377 = vsyncadd %s372, 0
          %s378 = smul.addr %s31, 8
          %s379 = scalar_lea.hbm %s0, %s378
          %s381 = sshll.u32 %s379, 4
          %s382 = int_to_ptr.hbm [resolvable:$true] %s381
          %s383 = sshll.u32 %s375, 4
          %s384 = int_to_ptr.vmem [resolvable:$true] %s383
          %386 = dma.hbm_to_vmem [thread:$0]  %s382, 128, %s384, %s372
        $region44: #{tpu_custom_call.1} parent=39 // pred_fallthru
          _
        // Predicated region
        $region45: #{tpu_custom_call.1} parent=39 // pred_check
          %p387 = pneg %p77
        $region46: #{tpu_custom_call.1} parent=39 // pred_check_branch
          %389 = sbr.rel (%p387) target = $region48
        $region47: #{tpu_custom_call.1} parent=39 // pred_region
          %s390 = sand.u32 %s31, 1
          %s391 = scalar_lea.sflag [#allocation6], %s390
          %s392 = sand.u32 %s67, 1
          %s393 = smul.addr %s392, 8
          %s394 = scalar_lea.vmem [#allocation5], %s393
          %396 = vsyncadd %s391, 0
          %s397 = smul.addr %s31, 8
          %s398 = scalar_lea.hbm %s1, %s397
          %s400 = sshll.u32 %s398, 4
          %s401 = int_to_ptr.hbm [resolvable:$true] %s400
          %s402 = sshll.u32 %s394, 4
          %s403 = int_to_ptr.vmem [resolvable:$true] %s402
          %405 = dma.hbm_to_vmem [thread:$0]  %s401, 128, %s403, %s391
        $region48: #{tpu_custom_call.1} parent=39 // pred_fallthru
          _
        // Predicated region
        $region49: #{tpu_custom_call.1} parent=39 // pred_check
          %p406 = pneg %p103
        $region50: #{tpu_custom_call.1} parent=39 // pred_check_branch
          %408 = sbr.rel (%p406) target = $region52
        $region51: #{tpu_custom_call.1} parent=39 // pred_region
          %s409 = sand.u32 %s31, 1
          %s410 = scalar_lea.sflag [#allocation6], %s409
          %s411 = sand.u32 %s93, 1
          %s412 = smul.addr %s411, 8
          %s413 = scalar_lea.vmem [#allocation7], %s412
          %415 = vsyncadd %s410, 0
          %s416 = smul.addr %s31, 8
          %s417 = scalar_lea.hbm %s2, %s416
          %s419 = sshll.u32 %s417, 4
          %s420 = int_to_ptr.hbm [resolvable:$true] %s419
          %s421 = sshll.u32 %s413, 4
          %s422 = int_to_ptr.vmem [resolvable:$true] %s421
          %424 = dma.hbm_to_vmem [thread:$0]  %s420, 128, %s422, %s410
        $region52: #{tpu_custom_call.1} parent=39 // pred_fallthru
          _
      $region40: #{tpu_custom_call.1} parent=5 // pred_fallthru
        _
      %p425 = scmp.le.s32.totalorder 1, %s31
      %p426 = scmp.lt.s32.totalorder %s31, 3
      %p427 = pnand %p425, %p426
      %p428 = pneg %p427
      // Predicated region
      $region53: #{tpu_custom_call.1} parent=5 // pred_check
        _
      $region54: #{tpu_custom_call.1} parent=5 // pred_check_branch
        %430 = sbr.rel (%p427) target = $region56
      $region55: #{tpu_custom_call.1} parent=5 // pred_region
        %s431 = ssub.s32 %s31, 1
        %s432 = sand.u32 %s44, 1
        %s433 = scalar_lea.sflag [#allocation3], %s432
        %s434 = sand.u32 %s44, 1
        %s435 = smul.addr %s434, 8
        %s436 = scalar_lea.vmem [#allocation2], %s435
        // Predicated region
        $region57: #{tpu_custom_call.1} parent=55 // pred_check
          %p437 = pneg %p57
        $region58: #{tpu_custom_call.1} parent=55 // pred_check_branch
          %439 = sbr.rel (%p437) target = $region60
        $region59: #{tpu_custom_call.1} parent=55 // pred_region
          %441 = dma.done %s433, 128
        $region60: #{tpu_custom_call.1} parent=55 // pred_fallthru
          _
        %s442 = sand.u32 %s36, 1
        %s443 = scalar_lea.sflag [#allocation6], %s442
        %s444 = sand.u32 %s70, 1
        %s445 = smul.addr %s444, 8
        %s446 = scalar_lea.vmem [#allocation5], %s445
        // Predicated region
        $region61: #{tpu_custom_call.1} parent=55 // pred_check
          %p447 = pneg %p83
        $region62: #{tpu_custom_call.1} parent=55 // pred_check_branch
          %449 = sbr.rel (%p447) target = $region64
        $region63: #{tpu_custom_call.1} parent=55 // pred_region
          %451 = dma.done %s443, 128
        $region64: #{tpu_custom_call.1} parent=55 // pred_fallthru
          _
        %s452 = sand.u32 %s36, 1
        %s453 = scalar_lea.sflag [#allocation6], %s452
        %s454 = sand.u32 %s96, 1
        %s455 = smul.addr %s454, 8
        %s456 = scalar_lea.vmem [#allocation7], %s455
        // Predicated region
        $region65: #{tpu_custom_call.1} parent=55 // pred_check
          %p457 = pneg %p109
        $region66: #{tpu_custom_call.1} parent=55 // pred_check_branch
          %459 = sbr.rel (%p457) target = $region68
        $region67: #{tpu_custom_call.1} parent=55 // pred_region
          %461 = dma.done %s453, 128
        $region68: #{tpu_custom_call.1} parent=55 // pred_fallthru
          _
        // Predicated region
        $region69: #{tpu_custom_call.1} parent=55 // pred_check
          %p462 = pneg %p130
        $region70: #{tpu_custom_call.1} parent=55 // pred_check_branch
          %464 = sbr.rel (%p462) target = $region72
        $region71: #{tpu_custom_call.1} parent=55 // pred_region
          %466 = dma.done [#allocation9], 512
        $region72: #{tpu_custom_call.1} parent=55 // pred_fallthru
          _
        // Predicated region
        $region73: #{tpu_custom_call.1} parent=55 // pred_check
          %p467 = pneg %p151
        $region74: #{tpu_custom_call.1} parent=55 // pred_check_branch
          %469 = sbr.rel (%p467) target = $region76
        $region75: #{tpu_custom_call.1} parent=55 // pred_region
          %471 = dma.done [#allocation9], 512
        $region76: #{tpu_custom_call.1} parent=55 // pred_fallthru
          _
        // Predicated region
        $region77: #{tpu_custom_call.1} parent=55 // pred_check
          %p472 = pneg %p172
        $region78: #{tpu_custom_call.1} parent=55 // pred_check_branch
          %474 = sbr.rel (%p472) target = $region80
        $region79: #{tpu_custom_call.1} parent=55 // pred_region
          %476 = dma.done [#allocation12], 512
        $region80: #{tpu_custom_call.1} parent=55 // pred_fallthru
          _
        // Predicated region
        $region81: #{tpu_custom_call.1} parent=55 // pred_check
          %p477 = pneg %p193
        $region82: #{tpu_custom_call.1} parent=55 // pred_check_branch
          %479 = sbr.rel (%p477) target = $region84
        $region83: #{tpu_custom_call.1} parent=55 // pred_region
          %481 = dma.done [#allocation12], 512
        $region84: #{tpu_custom_call.1} parent=55 // pred_fallthru
          _
        %s482 = sand.u32 %s44, 1
        %s483 = scalar_lea.sflag [#allocation3], %s482
        %s484 = sand.u32 %s44, 1
        %s485 = smul.addr %s484, 8
        %s486 = scalar_lea.vmem [#allocation2], %s485
        %p487 = pneg %p57
        %p488 = pneg %p54
        %s489 = sand.u32 %s36, 1
        %s490 = scalar_lea.sflag [#allocation6], %s489
        %s491 = sand.u32 %s70, 1
        %s492 = smul.addr %s491, 8
        %s493 = scalar_lea.vmem [#allocation5], %s492
        %p494 = pneg %p83
        %p495 = pneg %p80
        %s496 = sand.u32 %s36, 1
        %s497 = scalar_lea.sflag [#allocation6], %s496
        %s498 = sand.u32 %s96, 1
        %s499 = smul.addr %s498, 8
        %s500 = scalar_lea.vmem [#allocation7], %s499
        %p501 = pneg %p109
        %p502 = pneg %p106
        %p503 = pneg %p130
        %p504 = pneg %p127
        %p505 = pneg %p151
        %p506 = pneg %p148
        %p507 = pneg %p172
        %p508 = pneg %p169
        %p509 = pneg %p193
        %p510 = pneg %p190
        %p511 = pneg %p214
        %p512 = pneg %p211
        %p513 = pneg %p235
        %p514 = pneg %p232
        %p515 = pneg %p261
        %p516 = pneg %p258
        %s517 = sand.u32 %s248, 1
        %s518 = scalar_lea.sflag [#allocation4], %s517
        %s519 = sand.u32 %s248, 1
        %s520 = smul.addr %s519, 8
        %s521 = scalar_lea.vmem [#allocation14], %s520
        %p522 = pneg %p287
        %p523 = pneg %p284
        %s524 = sand.u32 %s274, 1
        %s525 = scalar_lea.sflag [#allocation16], %s524
        %s526 = sand.u32 %s274, 1
        %s527 = smul.addr %s526, 32
        %s528 = scalar_lea.vmem [#allocation15], %s527
        %s529 = smul.u32 4, %s36
        %v530 = vld [vmem:[%s436] sm:$0xff]
        %v531 = vld [vmem:[#allocation8] sm:$0xff]
        %v532 = vld [vmem:[#allocation8 + $0x8] sm:$0xff]
        %v533 = vld [vmem:[#allocation8 + $0x10] sm:$0xff]
        %v534 = vld [vmem:[#allocation8 + $0x18] sm:$0xff]
        %vm535 = vcmask 261120
        %v537 = vsel %vm535, %v530, 0
        %539 = vmatpush.msra.mxu0 0.0
        %540 = vmatpush.msra.mxu0 0.0
        %541 = vmatpush.msra.mxu0 0.0
        %542 = vmatpush.msra.mxu0 0.0
        %543 = vmatpush.msra.mxu0 0.0
        %544 = vmatpush.msra.mxu0 0.0
        %545 = vmatpush.msra.mxu0 0.0
        %546 = vmatpush.msra.mxu0 0.0
        %547 = vmatpush.msra.mxu0 0.0
        %548 = vmatpush.msra.mxu0 0.0
        %549 = vmatpush.msra.mxu0 0.0
        %550 = vmatpush.msra.mxu0 0.0
        %551 = vmatpush.msra.mxu0 %v534
        %552 = vmatpush.msra.mxu0 %v533
        %553 = vmatpush.msra.mxu0 %v532
        %554 = vmatpush.msra.mxu0 %v531
        %555 = vmatmul.f32.gmra.mxu0 %v537
        %v556 = vpop.f32.mrf.mxu0
        %v557 = vadd.f32 0.0, %v556
        %558 = vdwg.mxu0
        %v559 = vld [vmem:[%s446] sm:$0xff]
        %v560 = vld [vmem:[#allocation10] sm:$0xff]
        %v561 = vld [vmem:[#allocation10 + $0x8] sm:$0xff]
        %v562 = vld [vmem:[#allocation10 + $0x10] sm:$0xff]
        %v563 = vld [vmem:[#allocation10 + $0x18] sm:$0xff]
        %v565 = vsel %vm535, %v559, 0
        %567 = vmatpush.msra.mxu0 0.0
        %568 = vmatpush.msra.mxu0 0.0
        %569 = vmatpush.msra.mxu0 0.0
        %570 = vmatpush.msra.mxu0 0.0
        %571 = vmatpush.msra.mxu0 0.0
        %572 = vmatpush.msra.mxu0 0.0
        %573 = vmatpush.msra.mxu0 0.0
        %574 = vmatpush.msra.mxu0 0.0
        %575 = vmatpush.msra.mxu0 0.0
        %576 = vmatpush.msra.mxu0 0.0
        %577 = vmatpush.msra.mxu0 0.0
        %578 = vmatpush.msra.mxu0 0.0
        %579 = vmatpush.msra.mxu0 %v563
        %580 = vmatpush.msra.mxu0 %v562
        %581 = vmatpush.msra.mxu0 %v561
        %582 = vmatpush.msra.mxu0 %v560
        %583 = vmatmul.f32.gmra.mxu0 %v565
        %v584 = vpop.f32.mrf.mxu0
        %v585 = vadd.f32 0.0, %v584
        %586 = vdwg.mxu0
        %v587 = vld [vmem:[%s456] sm:$0xff]
        %v588 = vld [vmem:[#allocation11] sm:$0xff]
        %v589 = vld [vmem:[#allocation11 + $0x8] sm:$0xff]
        %v590 = vld [vmem:[#allocation11 + $0x10] sm:$0xff]
        %v591 = vld [vmem:[#allocation11 + $0x18] sm:$0xff]
        %v593 = vsel %vm535, %v587, 0
        %595 = vmatpush.msra.mxu0 0.0
        %596 = vmatpush.msra.mxu0 0.0
        %597 = vmatpush.msra.mxu0 0.0
        %598 = vmatpush.msra.mxu0 0.0
        %599 = vmatpush.msra.mxu0 0.0
        %600 = vmatpush.msra.mxu0 0.0
        %601 = vmatpush.msra.mxu0 0.0
        %602 = vmatpush.msra.mxu0 0.0
        %603 = vmatpush.msra.mxu0 0.0
        %604 = vmatpush.msra.mxu0 0.0
        %605 = vmatpush.msra.mxu0 0.0
        %606 = vmatpush.msra.mxu0 0.0
        %607 = vmatpush.msra.mxu0 %v591
        %608 = vmatpush.msra.mxu0 %v590
        %609 = vmatpush.msra.mxu0 %v589
        %610 = vmatpush.msra.mxu0 %v588
        %611 = vmatmul.f32.gmra.mxu0 %v593
        %v612 = vpop.f32.mrf.mxu0
        %v613 = vadd.f32 0.0, %v612
        %614 = vdwg.mxu0
        %616 = vrot.lane.b32.xlu0 %v557, 120
        %v617 = vpop.permute.xlu0 %616
        %619 = vrot.lane.b32.xlu0 %v557, 112
        %v620 = vpop.permute.xlu0 %619
        %622 = vrot.lane.b32.xlu0 %v557, 104
        %v623 = vpop.permute.xlu0 %622
        %v625 = vrot.slane %v620, 4
        %vm626 = vcmask 1047556
        %v627 = vsel %vm626, %v625, %v557
        %v628 = vrot.slane %v557, 4
        %v629 = vsel %vm626, %v620, %v628
        %v631 = vunpack.c.l.s4 1983009808
        %v632 = vunpack.c.0.s8 %v631
        %v633 = vperm.slane %v627, %v632
        %v635 = vunpack.c.l.s4 1983009808
        %v636 = vunpack.c.0.s8 %v635
        %v637 = vperm.slane %v629, %v636
        %v638 = vrot.slane %v623, 4
        %v639 = vsel %vm626, %v638, %v617
        %v640 = vrot.slane %v617, 4
        %v641 = vsel %vm626, %v623, %v640
        %v643 = vunpack.c.l.s4 1983009808
        %v644 = vunpack.c.0.s8 %v643
        %v645 = vperm.slane %v639, %v644
        %v647 = vunpack.c.l.s4 1983009808
        %v648 = vunpack.c.0.s8 %v647
        %v649 = vperm.slane %v641, %v648
        %v650 = vrot.slane %v645, 4
        %v651 = vsel %vm626, %v650, %v633
        %v652 = vrot.slane %v633, 4
        %v653 = vsel %vm626, %v645, %v652
        %v655 = vunpack.c.l.s4 1934713408
        %v656 = vunpack.c.0.s8 %v655
        %v657 = vperm.slane %v651, %v656
        %v659 = vunpack.c.l.s4 1934713408
        %v660 = vunpack.c.0.s8 %v659
        %v661 = vperm.slane %v653, %v660
        %v662 = vrot.slane %v649, 4
        %v663 = vsel %vm626, %v662, %v637
        %v664 = vrot.slane %v637, 4
        %v665 = vsel %vm626, %v649, %v664
        %v667 = vunpack.c.l.s4 1934713408
        %v668 = vunpack.c.0.s8 %v667
        %v669 = vperm.slane %v663, %v668
        %v671 = vunpack.c.l.s4 1934713408
        %v672 = vunpack.c.0.s8 %v671
        %v673 = vperm.slane %v665, %v672
        %v674 = vrot.slane %v657, 4
        %v675 = vsel %vm626, 0.0, %v674
        %v676 = vrot.slane %v661, 4
        %v677 = vsel %vm626, 0.0, %v676
        %v678 = vrot.slane %v669, 4
        %v679 = vsel %vm626, 0.0, %v678
        %v680 = vrot.slane %v673, 4
        %v681 = vsel %vm626, 0.0, %v680
        %v682 = vsel %vm626, %v676, %v657
        %v684 = vunpack.c.l.s4 1983009808
        %v685 = vunpack.c.0.s8 %v684
        %v686 = vperm.slane %v682, %v685
        %v687 = vrot.slane %v677, 4
        %v688 = vsel %vm626, %v687, %v675
        %v690 = vunpack.c.l.s4 1983009808
        %v691 = vunpack.c.0.s8 %v690
        %v692 = vperm.slane %v688, %v691
        %v693 = vsel %vm626, %v680, %v669
        %v695 = vunpack.c.l.s4 1983009808
        %v696 = vunpack.c.0.s8 %v695
        %v697 = vperm.slane %v693, %v696
        %v698 = vrot.slane %v681, 4
        %v699 = vsel %vm626, %v698, %v679
        %v701 = vunpack.c.l.s4 1983009808
        %v702 = vunpack.c.0.s8 %v701
        %v703 = vperm.slane %v699, %v702
        %v704 = vrot.slane %v692, 4
        %v705 = vsel %vm626, %v704, %v686
        %v706 = vrot.slane %v686, 4
        %v707 = vsel %vm626, %v692, %v706
        %v709 = vunpack.c.l.s4 1934713408
        %v710 = vunpack.c.0.s8 %v709
        %v711 = vperm.slane %v705, %v710
        %v713 = vunpack.c.l.s4 1934713408
        %v714 = vunpack.c.0.s8 %v713
        %v715 = vperm.slane %v707, %v714
        %v716 = vrot.slane %v703, 4
        %v717 = vsel %vm626, %v716, %v697
        %v718 = vrot.slane %v697, 4
        %v719 = vsel %vm626, %v703, %v718
        %v721 = vunpack.c.l.s4 1934713408
        %v722 = vunpack.c.0.s8 %v721
        %v723 = vperm.slane %v717, %v722
        %v725 = vunpack.c.l.s4 1934713408
        %v726 = vunpack.c.0.s8 %v725
        %v727 = vperm.slane %v719, %v726
        %v728 = vrot.slane %v723, 4
        %v729 = vsel %vm626, %v728, %v711
        %v730 = vrot.slane %v711, 4
        %v731 = vsel %vm626, %v723, %v730
        %v732 = vrot.slane %v727, 4
        %v733 = vsel %vm626, %v732, %v715
        %v734 = vrot.slane %v715, 4
        %v735 = vsel %vm626, %v727, %v734
        %737 = vrot.lane.b32.xlu0 %v585, 120
        %v738 = vpop.permute.xlu0 %737
        %740 = vrot.lane.b32.xlu0 %v585, 112
        %v741 = vpop.permute.xlu0 %740
        %743 = vrot.lane.b32.xlu0 %v585, 104
        %v744 = vpop.permute.xlu0 %743
        %v746 = vrot.slane %v741, 4
        %v747 = vsel %vm626, %v746, %v585
        %v748 = vrot.slane %v585, 4
        %v749 = vsel %vm626, %v741, %v748
        %v751 = vunpack.c.l.s4 1983009808
        %v752 = vunpack.c.0.s8 %v751
        %v753 = vperm.slane %v747, %v752
        %v755 = vunpack.c.l.s4 1983009808
        %v756 = vunpack.c.0.s8 %v755
        %v757 = vperm.slane %v749, %v756
        %v758 = vrot.slane %v744, 4
        %v759 = vsel %vm626, %v758, %v738
        %v760 = vrot.slane %v738, 4
        %v761 = vsel %vm626, %v744, %v760
        %v763 = vunpack.c.l.s4 1983009808
        %v764 = vunpack.c.0.s8 %v763
        %v765 = vperm.slane %v759, %v764
        %v767 = vunpack.c.l.s4 1983009808
        %v768 = vunpack.c.0.s8 %v767
        %v769 = vperm.slane %v761, %v768
        %v770 = vrot.slane %v765, 4
        %v771 = vsel %vm626, %v770, %v753
        %v772 = vrot.slane %v753, 4
        %v773 = vsel %vm626, %v765, %v772
        %v775 = vunpack.c.l.s4 1934713408
        %v776 = vunpack.c.0.s8 %v775
        %v777 = vperm.slane %v771, %v776
        %v779 = vunpack.c.l.s4 1934713408
        %v780 = vunpack.c.0.s8 %v779
        %v781 = vperm.slane %v773, %v780
        %v782 = vrot.slane %v769, 4
        %v783 = vsel %vm626, %v782, %v757
        %v784 = vrot.slane %v757, 4
        %v785 = vsel %vm626, %v769, %v784
        %v787 = vunpack.c.l.s4 1934713408
        %v788 = vunpack.c.0.s8 %v787
        %v789 = vperm.slane %v783, %v788
        %v791 = vunpack.c.l.s4 1934713408
        %v792 = vunpack.c.0.s8 %v791
        %v793 = vperm.slane %v785, %v792
        %v794 = vrot.slane %v777, 4
        %v795 = vsel %vm626, 0.0, %v794
        %v796 = vrot.slane %v781, 4
        %v797 = vsel %vm626, 0.0, %v796
        %v798 = vrot.slane %v789, 4
        %v799 = vsel %vm626, 0.0, %v798
        %v800 = vrot.slane %v793, 4
        %v801 = vsel %vm626, 0.0, %v800
        %v802 = vsel %vm626, %v796, %v777
        %v804 = vunpack.c.l.s4 1983009808
        %v805 = vunpack.c.0.s8 %v804
        %v806 = vperm.slane %v802, %v805
        %v807 = vrot.slane %v797, 4
        %v808 = vsel %vm626, %v807, %v795
        %v810 = vunpack.c.l.s4 1983009808
        %v811 = vunpack.c.0.s8 %v810
        %v812 = vperm.slane %v808, %v811
        %v813 = vsel %vm626, %v800, %v789
        %v815 = vunpack.c.l.s4 1983009808
        %v816 = vunpack.c.0.s8 %v815
        %v817 = vperm.slane %v813, %v816
        %v818 = vrot.slane %v801, 4
        %v819 = vsel %vm626, %v818, %v799
        %v821 = vunpack.c.l.s4 1983009808
        %v822 = vunpack.c.0.s8 %v821
        %v823 = vperm.slane %v819, %v822
        %v824 = vrot.slane %v812, 4
        %v825 = vsel %vm626, %v824, %v806
        %v826 = vrot.slane %v806, 4
        %v827 = vsel %vm626, %v812, %v826
        %v829 = vunpack.c.l.s4 1934713408
        %v830 = vunpack.c.0.s8 %v829
        %v831 = vperm.slane %v825, %v830
        %v833 = vunpack.c.l.s4 1934713408
        %v834 = vunpack.c.0.s8 %v833
        %v835 = vperm.slane %v827, %v834
        %v836 = vrot.slane %v823, 4
        %v837 = vsel %vm626, %v836, %v817
        %v838 = vrot.slane %v817, 4
        %v839 = vsel %vm626, %v823, %v838
        %v841 = vunpack.c.l.s4 1934713408
        %v842 = vunpack.c.0.s8 %v841
        %v843 = vperm.slane %v837, %v842
        %v845 = vunpack.c.l.s4 1934713408
        %v846 = vunpack.c.0.s8 %v845
        %v847 = vperm.slane %v839, %v846
        %v848 = vrot.slane %v843, 4
        %v849 = vsel %vm626, %v848, %v831
        %v850 = vrot.slane %v831, 4
        %v851 = vsel %vm626, %v843, %v850
        %v852 = vrot.slane %v847, 4
        %v853 = vsel %vm626, %v852, %v835
        %v854 = vrot.slane %v835, 4
        %v855 = vsel %vm626, %v847, %v854
        %857 = vrot.lane.b32.xlu0 %v613, 120
        %v858 = vpop.permute.xlu0 %857
        %860 = vrot.lane.b32.xlu0 %v613, 112
        %v861 = vpop.permute.xlu0 %860
        %863 = vrot.lane.b32.xlu0 %v613, 104
        %v864 = vpop.permute.xlu0 %863
        %v866 = vrot.slane %v861, 4
        %v867 = vsel %vm626, %v866, %v613
        %v868 = vrot.slane %v613, 4
        %v869 = vsel %vm626, %v861, %v868
        %v871 = vunpack.c.l.s4 1983009808
        %v872 = vunpack.c.0.s8 %v871
        %v873 = vperm.slane %v867, %v872
        %v875 = vunpack.c.l.s4 1983009808
        %v876 = vunpack.c.0.s8 %v875
        %v877 = vperm.slane %v869, %v876
        %v878 = vrot.slane %v864, 4
        %v879 = vsel %vm626, %v878, %v858
        %v880 = vrot.slane %v858, 4
        %v881 = vsel %vm626, %v864, %v880
        %v883 = vunpack.c.l.s4 1983009808
        %v884 = vunpack.c.0.s8 %v883
        %v885 = vperm.slane %v879, %v884
        %v887 = vunpack.c.l.s4 1983009808
        %v888 = vunpack.c.0.s8 %v887
        %v889 = vperm.slane %v881, %v888
        %v890 = vrot.slane %v885, 4
        %v891 = vsel %vm626, %v890, %v873
        %v892 = vrot.slane %v873, 4
        %v893 = vsel %vm626, %v885, %v892
        %v895 = vunpack.c.l.s4 1934713408
        %v896 = vunpack.c.0.s8 %v895
        %v897 = vperm.slane %v891, %v896
        %v899 = vunpack.c.l.s4 1934713408
        %v900 = vunpack.c.0.s8 %v899
        %v901 = vperm.slane %v893, %v900
        %v902 = vrot.slane %v889, 4
        %v903 = vsel %vm626, %v902, %v877
        %v904 = vrot.slane %v877, 4
        %v905 = vsel %vm626, %v889, %v904
        %v907 = vunpack.c.l.s4 1934713408
        %v908 = vunpack.c.0.s8 %v907
        %v909 = vperm.slane %v903, %v908
        %v911 = vunpack.c.l.s4 1934713408
        %v912 = vunpack.c.0.s8 %v911
        %v913 = vperm.slane %v905, %v912
        %v914 = vrot.slane %v897, 4
        %v915 = vsel %vm626, 0.0, %v914
        %v916 = vrot.slane %v901, 4
        %v917 = vsel %vm626, 0.0, %v916
        %v918 = vrot.slane %v909, 4
        %v919 = vsel %vm626, 0.0, %v918
        %v920 = vrot.slane %v913, 4
        %v921 = vsel %vm626, 0.0, %v920
        %v922 = vsel %vm626, %v916, %v897
        %v924 = vunpack.c.l.s4 1983009808
        %v925 = vunpack.c.0.s8 %v924
        %v926 = vperm.slane %v922, %v925
        %v927 = vrot.slane %v917, 4
        %v928 = vsel %vm626, %v927, %v915
        %v930 = vunpack.c.l.s4 1983009808
        %v931 = vunpack.c.0.s8 %v930
        %v932 = vperm.slane %v928, %v931
        %v933 = vsel %vm626, %v920, %v909
        %v935 = vunpack.c.l.s4 1983009808
        %v936 = vunpack.c.0.s8 %v935
        %v937 = vperm.slane %v933, %v936
        %v938 = vrot.slane %v921, 4
        %v939 = vsel %vm626, %v938, %v919
        %v941 = vunpack.c.l.s4 1983009808
        %v942 = vunpack.c.0.s8 %v941
        %v943 = vperm.slane %v939, %v942
        %v944 = vrot.slane %v932, 4
        %v945 = vsel %vm626, %v944, %v926
        %v946 = vrot.slane %v926, 4
        %v947 = vsel %vm626, %v932, %v946
        %v949 = vunpack.c.l.s4 1934713408
        %v950 = vunpack.c.0.s8 %v949
        %v951 = vperm.slane %v945, %v950
        %v953 = vunpack.c.l.s4 1934713408
        %v954 = vunpack.c.0.s8 %v953
        %v955 = vperm.slane %v947, %v954
        %v956 = vrot.slane %v943, 4
        %v957 = vsel %vm626, %v956, %v937
        %v958 = vrot.slane %v937, 4
        %v959 = vsel %vm626, %v943, %v958
        %v961 = vunpack.c.l.s4 1934713408
        %v962 = vunpack.c.0.s8 %v961
        %v963 = vperm.slane %v957, %v962
        %v965 = vunpack.c.l.s4 1934713408
        %v966 = vunpack.c.0.s8 %v965
        %v967 = vperm.slane %v959, %v966
        %v968 = vrot.slane %v963, 4
        %v969 = vsel %vm626, %v968, %v951
        %v970 = vrot.slane %v951, 4
        %v971 = vsel %vm626, %v963, %v970
        %v972 = vrot.slane %v967, 4
        %v973 = vsel %vm626, %v972, %v955
        %v974 = vrot.slane %v955, 4
        %v975 = vsel %vm626, %v967, %v974
        %vm976 = vcmask 64512
        %v978 = vsel %vm976, %v729, 0
        %v981 = vsel %vm976, %v849, 0
        %983 = vmatpush.xpose.msra.mxu0 0.0
        %984 = vmatpush.xpose.msra.mxu0 0.0
        %985 = vmatpush.xpose.msra.mxu0 0.0
        %986 = vmatpush.xpose.msra.mxu0 0.0
        %987 = vmatpush.xpose.msra.mxu0 0.0
        %988 = vmatpush.xpose.msra.mxu0 0.0
        %989 = vmatpush.xpose.msra.mxu0 0.0
        %990 = vmatpush.xpose.msra.mxu0 0.0
        %991 = vmatpush.xpose.msra.mxu0 0.0
        %992 = vmatpush.xpose.msra.mxu0 0.0
        %993 = vmatpush.xpose.msra.mxu0 0.0
        %994 = vmatpush.xpose.msra.mxu0 0.0
        %995 = vmatpush.xpose.msra.mxu0 0.0
        %996 = vmatpush.xpose.msra.mxu0 0.0
        %997 = vmatpush.xpose.msra.mxu0 0.0
        %998 = vmatpush.xpose.msra.mxu0 %v981
        %999 = vmatmul.f32.gmra.mxu0 %v978
        %v1000 = vpop.f32.mrf.mxu0
        %v1001 = vadd.f32 0.0, %v1000
        %1002 = vdwg.mxu0
        %v1004 = vsel %vm976, %v731, 0
        %v1007 = vsel %vm976, %v851, 0
        %1009 = vmatpush.xpose.msra.mxu0 0.0
        %1010 = vmatpush.xpose.msra.mxu0 0.0
        %1011 = vmatpush.xpose.msra.mxu0 0.0
        %1012 = vmatpush.xpose.msra.mxu0 0.0
        %1013 = vmatpush.xpose.msra.mxu0 0.0
        %1014 = vmatpush.xpose.msra.mxu0 0.0
        %1015 = vmatpush.xpose.msra.mxu0 0.0
        %1016 = vmatpush.xpose.msra.mxu0 0.0
        %1017 = vmatpush.xpose.msra.mxu0 0.0
        %1018 = vmatpush.xpose.msra.mxu0 0.0
        %1019 = vmatpush.xpose.msra.mxu0 0.0
        %1020 = vmatpush.xpose.msra.mxu0 0.0
        %1021 = vmatpush.xpose.msra.mxu0 0.0
        %1022 = vmatpush.xpose.msra.mxu0 0.0
        %1023 = vmatpush.xpose.msra.mxu0 0.0
        %1024 = vmatpush.xpose.msra.mxu0 %v1007
        %1025 = vmatmul.f32.gmra.mxu0 %v1004
        %v1026 = vpop.f32.mrf.mxu0
        %v1027 = vadd.f32 0.0, %v1026
        %1028 = vdwg.mxu0
        %v1030 = vsel %vm976, %v733, 0
        %v1033 = vsel %vm976, %v853, 0
        %1035 = vmatpush.xpose.msra.mxu0 0.0
        %1036 = vmatpush.xpose.msra.mxu0 0.0
        %1037 = vmatpush.xpose.msra.mxu0 0.0
        %1038 = vmatpush.xpose.msra.mxu0 0.0
        %1039 = vmatpush.xpose.msra.mxu0 0.0
        %1040 = vmatpush.xpose.msra.mxu0 0.0
        %1041 = vmatpush.xpose.msra.mxu0 0.0
        %1042 = vmatpush.xpose.msra.mxu0 0.0
        %1043 = vmatpush.xpose.msra.mxu0 0.0
        %1044 = vmatpush.xpose.msra.mxu0 0.0
        %1045 = vmatpush.xpose.msra.mxu0 0.0
        %1046 = vmatpush.xpose.msra.mxu0 0.0
        %1047 = vmatpush.xpose.msra.mxu0 0.0
        %1048 = vmatpush.xpose.msra.mxu0 0.0
        %1049 = vmatpush.xpose.msra.mxu0 0.0
        %1050 = vmatpush.xpose.msra.mxu0 %v1033
        %1051 = vmatmul.f32.gmra.mxu0 %v1030
        %v1052 = vpop.f32.mrf.mxu0
        %v1053 = vadd.f32 0.0, %v1052
        %1054 = vdwg.mxu0
        %v1056 = vsel %vm976, %v735, 0
        %v1059 = vsel %vm976, %v855, 0
        %1061 = vmatpush.xpose.msra.mxu0 0.0
        %1062 = vmatpush.xpose.msra.mxu0 0.0
        %1063 = vmatpush.xpose.msra.mxu0 0.0
        %1064 = vmatpush.xpose.msra.mxu0 0.0
        %1065 = vmatpush.xpose.msra.mxu0 0.0
        %1066 = vmatpush.xpose.msra.mxu0 0.0
        %1067 = vmatpush.xpose.msra.mxu0 0.0
        %1068 = vmatpush.xpose.msra.mxu0 0.0
        %1069 = vmatpush.xpose.msra.mxu0 0.0
        %1070 = vmatpush.xpose.msra.mxu0 0.0
        %1071 = vmatpush.xpose.msra.mxu0 0.0
        %1072 = vmatpush.xpose.msra.mxu0 0.0
        %1073 = vmatpush.xpose.msra.mxu0 0.0
        %1074 = vmatpush.xpose.msra.mxu0 0.0
        %1075 = vmatpush.xpose.msra.mxu0 0.0
        %1076 = vmatpush.xpose.msra.mxu0 %v1059
        %1077 = vmatmul.f32.gmra.mxu0 %v1056
        %v1078 = vpop.f32.mrf.mxu0
        %v1079 = vadd.f32 0.0, %v1078
        %1080 = vdwg.mxu0
        %v1081 = vmul.f32 %v1001, 0.35355338
        %v1082 = vmul.f32 %v1027, 0.35355338
        %v1083 = vmul.f32 %v1053, 0.35355338
        %v1084 = vmul.f32 %v1079, 0.35355338
        %v1085 = vsel %vm976, %v1081, -inf
        %1086 = vmax.xlane.f32.xlu0 %v1085
        %v1087 = vpop.xlane.xlu0 %1086
        %v1088 = vsel %vm976, %v1082, -inf
        %1089 = vmax.xlane.f32.xlu0 %v1088
        %v1090 = vpop.xlane.xlu0 %1089
        %v1091 = vsel %vm976, %v1083, -inf
        %1092 = vmax.xlane.f32.xlu0 %v1091
        %v1093 = vpop.xlane.xlu0 %1092
        %v1094 = vsel %vm976, %v1084, -inf
        %1095 = vmax.xlane.f32.xlu0 %v1094
        %v1096 = vpop.xlane.xlu0 %1095
        %v1097 = vsub.f32 %v1081, %v1087
        %v1098 = vsub.f32 %v1082, %v1090
        %v1099 = vsub.f32 %v1083, %v1093
        %v1100 = vsub.f32 %v1084, %v1096
        %v1101 = vmul.f32 %v1097, 1.442695
        %v1102 = vpow.pop %v1101
        %v1103 = vmul.f32 %v1098, 1.442695
        %v1104 = vpow.pop %v1103
        %v1105 = vmul.f32 %v1099, 1.442695
        %v1106 = vpow.pop %v1105
        %v1107 = vmul.f32 %v1100, 1.442695
        %v1108 = vpow.pop %v1107
        %v1109 = vsel %vm976, %v1102, 0.0
        %1110 = vadd.xlane.f32.xlu0 %v1109
        %v1111 = vpop.xlane.xlu0 %1110
        %v1112 = vsel %vm976, %v1104, 0.0
        %1113 = vadd.xlane.f32.xlu0 %v1112
        %v1114 = vpop.xlane.xlu0 %1113
        %v1115 = vsel %vm976, %v1106, 0.0
        %1116 = vadd.xlane.f32.xlu0 %v1115
        %v1117 = vpop.xlane.xlu0 %1116
        %v1118 = vsel %vm976, %v1108, 0.0
        %1119 = vadd.xlane.f32.xlu0 %v1118
        %v1120 = vpop.xlane.xlu0 %1119
        %v1121 = vrcp.pop %v1111
        %v1122 = vmul.f32 %v1111, %v1121
        %v1123 = vsub.f32 1.0, %v1122
        %v1124 = vmul.f32 %v1121, %v1123
        %v1125 = vadd.f32 %v1121, %v1124
        %vm1126 = vweird.f32 %v1111
        %vm1127 = vweird.f32 %v1121
        %vm1128 = vmor %vm1126, %vm1127
        %v1129 = vsel %vm1128, %v1121, %v1125
        %v1130 = vand.u32 2147483647, %v1111
        %vm1131 = vcmp.eq.f32.partialorder %v1130, 8.507059e+37
        %v1132 = vand.u32 %v1111, 2147483648
        %v1133 = vor.u32 1.1754944e-38, %v1132
        %v1134 = vsel %vm1131, %v1133, %v1129
        %v1135 = vrcp.pop %v1114
        %v1136 = vmul.f32 %v1114, %v1135
        %v1137 = vsub.f32 1.0, %v1136
        %v1138 = vmul.f32 %v1135, %v1137
        %v1139 = vadd.f32 %v1135, %v1138
        %vm1140 = vweird.f32 %v1114
        %vm1141 = vweird.f32 %v1135
        %vm1142 = vmor %vm1140, %vm1141
        %v1143 = vsel %vm1142, %v1135, %v1139
        %v1144 = vand.u32 2147483647, %v1114
        %vm1145 = vcmp.eq.f32.partialorder %v1144, 8.507059e+37
        %v1146 = vand.u32 %v1114, 2147483648
        %v1147 = vor.u32 1.1754944e-38, %v1146
        %v1148 = vsel %vm1145, %v1147, %v1143
        %v1149 = vrcp.pop %v1117
        %v1150 = vmul.f32 %v1117, %v1149
        %v1151 = vsub.f32 1.0, %v1150
        %v1152 = vmul.f32 %v1149, %v1151
        %v1153 = vadd.f32 %v1149, %v1152
        %vm1154 = vweird.f32 %v1117
        %vm1155 = vweird.f32 %v1149
        %vm1156 = vmor %vm1154, %vm1155
        %v1157 = vsel %vm1156, %v1149, %v1153
        %v1158 = vand.u32 2147483647, %v1117
        %vm1159 = vcmp.eq.f32.partialorder %v1158, 8.507059e+37
        %v1160 = vand.u32 %v1117, 2147483648
        %v1161 = vor.u32 1.1754944e-38, %v1160
        %v1162 = vsel %vm1159, %v1161, %v1157
        %v1163 = vrcp.pop %v1120
        %v1164 = vmul.f32 %v1120, %v1163
        %v1165 = vsub.f32 1.0, %v1164
        %v1166 = vmul.f32 %v1163, %v1165
        %v1167 = vadd.f32 %v1163, %v1166
        %vm1168 = vweird.f32 %v1120
        %vm1169 = vweird.f32 %v1163
        %vm1170 = vmor %vm1168, %vm1169
        %v1171 = vsel %vm1170, %v1163, %v1167
        %v1172 = vand.u32 2147483647, %v1120
        %vm1173 = vcmp.eq.f32.partialorder %v1172, 8.507059e+37
        %v1174 = vand.u32 %v1120, 2147483648
        %v1175 = vor.u32 1.1754944e-38, %v1174
        %v1176 = vsel %vm1173, %v1175, %v1171
        %v1177 = vmul.f32 %v1102, %v1134
        %v1178 = vmul.f32 %v1104, %v1148
        %v1179 = vmul.f32 %v1106, %v1162
        %v1180 = vmul.f32 %v1108, %v1176
        %1181 = vst.msk [vmem:[%s528] sm:$0xff] %vm976, %v1177
        %1182 = vst.msk [vmem:[%s528 + $0x8] sm:$0xff] %vm976, %v1178
        %1183 = vst.msk [vmem:[%s528 + $0x10] sm:$0xff] %vm976, %v1179
        %1184 = vst.msk [vmem:[%s528 + $0x18] sm:$0xff] %vm976, %v1180
        %v1186 = vsel %vm976, %v1177, 0
        %1188 = vmatpush.msra.mxu0 0.0
        %1189 = vmatpush.msra.mxu0 0.0
        %1190 = vmatpush.msra.mxu0 0.0
        %1191 = vmatpush.msra.mxu0 0.0
        %1192 = vmatpush.msra.mxu0 0.0
        %1193 = vmatpush.msra.mxu0 0.0
        %1194 = vmatpush.msra.mxu0 0.0
        %1195 = vmatpush.msra.mxu0 0.0
        %1196 = vmatpush.msra.mxu0 0.0
        %1197 = vmatpush.msra.mxu0 0.0
        %1198 = vmatpush.msra.mxu0 0.0
        %1199 = vmatpush.msra.mxu0 0.0
        %1200 = vmatpush.msra.mxu0 0.0
        %1201 = vmatpush.msra.mxu0 0.0
        %1202 = vmatpush.msra.mxu0 0.0
        %1203 = vmatpush.msra.mxu0 %v969
        %1204 = vmatmul.f32.gmra.mxu0 %v1186
        %v1205 = vpop.f32.mrf.mxu0
        %v1206 = vadd.f32 0.0, %v1205
        %1207 = vdwg.mxu0
        %v1209 = vsel %vm976, %v1178, 0
        %1211 = vmatpush.msra.mxu0 0.0
        %1212 = vmatpush.msra.mxu0 0.0
        %1213 = vmatpush.msra.mxu0 0.0
        %1214 = vmatpush.msra.mxu0 0.0
        %1215 = vmatpush.msra.mxu0 0.0
        %1216 = vmatpush.msra.mxu0 0.0
        %1217 = vmatpush.msra.mxu0 0.0
        %1218 = vmatpush.msra.mxu0 0.0
        %1219 = vmatpush.msra.mxu0 0.0
        %1220 = vmatpush.msra.mxu0 0.0
        %1221 = vmatpush.msra.mxu0 0.0
        %1222 = vmatpush.msra.mxu0 0.0
        %1223 = vmatpush.msra.mxu0 0.0
        %1224 = vmatpush.msra.mxu0 0.0
        %1225 = vmatpush.msra.mxu0 0.0
        %1226 = vmatpush.msra.mxu0 %v971
        %1227 = vmatmul.f32.gmra.mxu0 %v1209
        %v1228 = vpop.f32.mrf.mxu0
        %v1229 = vadd.f32 0.0, %v1228
        %1230 = vdwg.mxu0
        %v1232 = vsel %vm976, %v1179, 0
        %1234 = vmatpush.msra.mxu0 0.0
        %1235 = vmatpush.msra.mxu0 0.0
        %1236 = vmatpush.msra.mxu0 0.0
        %1237 = vmatpush.msra.mxu0 0.0
        %1238 = vmatpush.msra.mxu0 0.0
        %1239 = vmatpush.msra.mxu0 0.0
        %1240 = vmatpush.msra.mxu0 0.0
        %1241 = vmatpush.msra.mxu0 0.0
        %1242 = vmatpush.msra.mxu0 0.0
        %1243 = vmatpush.msra.mxu0 0.0
        %1244 = vmatpush.msra.mxu0 0.0
        %1245 = vmatpush.msra.mxu0 0.0
        %1246 = vmatpush.msra.mxu0 0.0
        %1247 = vmatpush.msra.mxu0 0.0
        %1248 = vmatpush.msra.mxu0 0.0
        %1249 = vmatpush.msra.mxu0 %v973
        %1250 = vmatmul.f32.gmra.mxu0 %v1232
        %v1251 = vpop.f32.mrf.mxu0
        %v1252 = vadd.f32 0.0, %v1251
        %1253 = vdwg.mxu0
        %v1255 = vsel %vm976, %v1180, 0
        %1257 = vmatpush.msra.mxu0 0.0
        %1258 = vmatpush.msra.mxu0 0.0
        %1259 = vmatpush.msra.mxu0 0.0
        %1260 = vmatpush.msra.mxu0 0.0
        %1261 = vmatpush.msra.mxu0 0.0
        %1262 = vmatpush.msra.mxu0 0.0
        %1263 = vmatpush.msra.mxu0 0.0
        %1264 = vmatpush.msra.mxu0 0.0
        %1265 = vmatpush.msra.mxu0 0.0
        %1266 = vmatpush.msra.mxu0 0.0
        %1267 = vmatpush.msra.mxu0 0.0
        %1268 = vmatpush.msra.mxu0 0.0
        %1269 = vmatpush.msra.mxu0 0.0
        %1270 = vmatpush.msra.mxu0 0.0
        %1271 = vmatpush.msra.mxu0 0.0
        %1272 = vmatpush.msra.mxu0 %v975
        %1273 = vmatmul.f32.gmra.mxu0 %v1255
        %v1274 = vpop.f32.mrf.mxu0
        %v1275 = vadd.f32 0.0, %v1274
        %1276 = vdwg.mxu0
        %v1277 = vrot.slane %v1252, 4
        %v1278 = vsel %vm626, %v1277, %v1206
        %v1279 = vrot.slane %v1206, 4
        %v1280 = vsel %vm626, %v1252, %v1279
        %v1282 = vunpack.c.l.s4 1983009808
        %v1283 = vunpack.c.0.s8 %v1282
        %v1284 = vperm.slane %v1278, %v1283
        %v1286 = vunpack.c.l.s4 1983009808
        %v1287 = vunpack.c.0.s8 %v1286
        %v1288 = vperm.slane %v1280, %v1287
        %v1289 = vrot.slane %v1275, 4
        %v1290 = vsel %vm626, %v1289, %v1229
        %v1291 = vrot.slane %v1229, 4
        %v1292 = vsel %vm626, %v1275, %v1291
        %v1294 = vunpack.c.l.s4 1983009808
        %v1295 = vunpack.c.0.s8 %v1294
        %v1296 = vperm.slane %v1290, %v1295
        %v1298 = vunpack.c.l.s4 1983009808
        %v1299 = vunpack.c.0.s8 %v1298
        %v1300 = vperm.slane %v1292, %v1299
        %v1301 = vrot.slane %v1296, 4
        %v1302 = vsel %vm626, %v1301, %v1284
        %v1303 = vrot.slane %v1284, 4
        %v1304 = vsel %vm626, %v1296, %v1303
        %v1306 = vunpack.c.l.s4 1934713408
        %v1307 = vunpack.c.0.s8 %v1306
        %v1308 = vperm.slane %v1302, %v1307
        %v1310 = vunpack.c.l.s4 1934713408
        %v1311 = vunpack.c.0.s8 %v1310
        %v1312 = vperm.slane %v1304, %v1311
        %v1313 = vrot.slane %v1300, 4
        %v1314 = vsel %vm626, %v1313, %v1288
        %v1315 = vrot.slane %v1288, 4
        %v1316 = vsel %vm626, %v1300, %v1315
        %v1318 = vunpack.c.l.s4 1934713408
        %v1319 = vunpack.c.0.s8 %v1318
        %v1320 = vperm.slane %v1314, %v1319
        %v1322 = vunpack.c.l.s4 1934713408
        %v1323 = vunpack.c.0.s8 %v1322
        %v1324 = vperm.slane %v1316, %v1323
        %v1325 = vrot.slane %v1308, 4
        %v1326 = vsel %vm626, 0.0, %v1325
        %v1327 = vrot.slane %v1312, 4
        %v1328 = vsel %vm626, 0.0, %v1327
        %v1329 = vrot.slane %v1320, 4
        %v1330 = vsel %vm626, 0.0, %v1329
        %v1331 = vrot.slane %v1324, 4
        %v1332 = vsel %vm626, 0.0, %v1331
        %v1333 = vsel %vm626, %v1327, %v1308
        %v1335 = vunpack.c.l.s4 1983009808
        %v1336 = vunpack.c.0.s8 %v1335
        %v1337 = vperm.slane %v1333, %v1336
        %v1338 = vrot.slane %v1328, 4
        %v1339 = vsel %vm626, %v1338, %v1326
        %v1341 = vunpack.c.l.s4 1983009808
        %v1342 = vunpack.c.0.s8 %v1341
        %v1343 = vperm.slane %v1339, %v1342
        %v1344 = vsel %vm626, %v1331, %v1320
        %v1346 = vunpack.c.l.s4 1983009808
        %v1347 = vunpack.c.0.s8 %v1346
        %v1348 = vperm.slane %v1344, %v1347
        %v1349 = vrot.slane %v1332, 4
        %v1350 = vsel %vm626, %v1349, %v1330
        %v1352 = vunpack.c.l.s4 1983009808
        %v1353 = vunpack.c.0.s8 %v1352
        %v1354 = vperm.slane %v1350, %v1353
        %v1355 = vrot.slane %v1343, 4
        %v1356 = vsel %vm626, %v1355, %v1337
        %v1357 = vrot.slane %v1337, 4
        %v1358 = vsel %vm626, %v1343, %v1357
        %v1360 = vunpack.c.l.s4 1934713408
        %v1361 = vunpack.c.0.s8 %v1360
        %v1362 = vperm.slane %v1356, %v1361
        %v1364 = vunpack.c.l.s4 1934713408
        %v1365 = vunpack.c.0.s8 %v1364
        %v1366 = vperm.slane %v1358, %v1365
        %v1367 = vrot.slane %v1354, 4
        %v1368 = vsel %vm626, %v1367, %v1348
        %v1369 = vrot.slane %v1348, 4
        %v1370 = vsel %vm626, %v1354, %v1369
        %v1372 = vunpack.c.l.s4 1934713408
        %v1373 = vunpack.c.0.s8 %v1372
        %v1374 = vperm.slane %v1368, %v1373
        %v1376 = vunpack.c.l.s4 1934713408
        %v1377 = vunpack.c.0.s8 %v1376
        %v1378 = vperm.slane %v1370, %v1377
        %v1379 = vrot.slane %v1374, 4
        %v1380 = vsel %vm626, %v1379, %v1362
        %v1381 = vrot.slane %v1362, 4
        %v1382 = vsel %vm626, %v1374, %v1381
        %v1383 = vrot.slane %v1378, 4
        %v1384 = vsel %vm626, %v1383, %v1366
        %v1385 = vrot.slane %v1366, 4
        %v1386 = vsel %vm626, %v1378, %v1385
        %1388 = vrot.lane.b32.xlu0 %v1382, 8
        %v1389 = vpop.permute.xlu0 %1388
        %1392 = vrot.lane.b32.xlu0 %v1384, 16
        %v1393 = vpop.permute.xlu0 %1392
        %1396 = vrot.lane.b32.xlu0 %v1386, 24
        %v1397 = vpop.permute.xlu0 %1396
        %v1399 = vsel %vm976, %v1380, %v1389
        %vm1400 = vcmask 130048
        %v1401 = vsel %vm1400, %v1399, %v1393
        %vm1402 = vcmask 195584
        %v1403 = vsel %vm1402, %v1401, %v1397
        %v1404 = vld [vmem:[#allocation13] sm:$0xff]
        %v1405 = vld [vmem:[#allocation13 + $0x8] sm:$0xff]
        %v1406 = vld [vmem:[#allocation13 + $0x10] sm:$0xff]
        %v1407 = vld [vmem:[#allocation13 + $0x18] sm:$0xff]
        %v1409 = vsel %vm535, %v1403, 0
        %1411 = vmatpush.msra.mxu0 0.0
        %1412 = vmatpush.msra.mxu0 0.0
        %1413 = vmatpush.msra.mxu0 0.0
        %1414 = vmatpush.msra.mxu0 0.0
        %1415 = vmatpush.msra.mxu0 0.0
        %1416 = vmatpush.msra.mxu0 0.0
        %1417 = vmatpush.msra.mxu0 0.0
        %1418 = vmatpush.msra.mxu0 0.0
        %1419 = vmatpush.msra.mxu0 0.0
        %1420 = vmatpush.msra.mxu0 0.0
        %1421 = vmatpush.msra.mxu0 0.0
        %1422 = vmatpush.msra.mxu0 0.0
        %1423 = vmatpush.msra.mxu0 %v1407
        %1424 = vmatpush.msra.mxu0 %v1406
        %1425 = vmatpush.msra.mxu0 %v1405
        %1426 = vmatpush.msra.mxu0 %v1404
        %1427 = vmatmul.f32.gmra.mxu0 %v1409
        %v1428 = vpop.f32.mrf.mxu0
        %v1429 = vadd.f32 %v530, %v1428
        %1430 = vdwg.mxu0
        %v1431 = vsel %vm535, %v1429, 0.0
        %1432 = vadd.xlane.f32.xlu0 %v1431
        %v1433 = vpop.xlane.xlu0 %1432
        %v1434 = vrcp.pop 32.0
        %v1435 = vmul.f32 32.0, %v1434
        %v1436 = vsub.f32 1.0, %v1435
        %v1437 = vmul.f32 %v1434, %v1436
        %v1438 = vadd.f32 %v1434, %v1437
        %vm1439 = vweird.f32 %v1434
        %v1440 = vsel %vm1439, %v1434, %v1438
        %v1441 = vmul.f32 %v1433, %v1440
        %v1442 = vmul.f32 %v1429, %v1429
        %v1443 = vsel %vm535, %v1442, 0.0
        %1444 = vadd.xlane.f32.xlu0 %v1443
        %v1445 = vpop.xlane.xlu0 %1444
        %v1446 = vmul.f32 %v1445, %v1440
        %v1447 = vmul.f32 %v1441, %v1441
        %v1448 = vsub.f32 %v1446, %v1447
        %v1449 = vsub.f32 %v1429, %v1441
        %v1450 = vadd.f32 %v1448, 1e-05
        %v1451 = vrsqrt.pop %v1450
        %v1452 = vmul.f32 %v1451, %v1450
        %v1453 = vmul.f32 %v1452, %v1451
        %v1454 = vmul.f32 0.5, %v1453
        %v1455 = vsub.f32 1.5, %v1454
        %v1456 = vmul.f32 %v1451, %v1455
        %vm1457 = vweird.f32 %v1450
        %vm1458 = vweird.f32 %v1451
        %vm1459 = vmor %vm1457, %vm1458
        %v1460 = vsel %vm1459, %v1451, %v1456
        %v1461 = vmul.f32 %v1449, %v1460
        %v1462 = vld [vmem:[%s7] sm:$0x1]
        %v1464 = vperm.slane %v1462, 0
        %v1466 = vmul.f32 %v1461, %v1464
        %v1467 = vld [vmem:[%s8] sm:$0x1]
        %v1469 = vperm.slane %v1467, 0
        %v1471 = vadd.f32 %v1466, %v1469
        %1472 = vst.msk [vmem:[%s521] sm:$0xff] %vm535, %v1471
        %s1473 = sand.u32 %s248, 1
        %s1474 = scalar_lea.sflag [#allocation4], %s1473
        %s1475 = sand.u32 %s248, 1
        %s1476 = smul.addr %s1475, 8
        %s1477 = scalar_lea.vmem [#allocation14], %s1476
        %s1478 = sand.u32 %s274, 1
        %s1479 = scalar_lea.sflag [#allocation16], %s1478
        %s1480 = sand.u32 %s274, 1
        %s1481 = smul.addr %s1480, 32
        %s1482 = scalar_lea.vmem [#allocation15], %s1481
        // Predicated region
        $region85: #{tpu_custom_call.1} parent=55 // pred_check
          %p1483 = pneg %p258
        $region86: #{tpu_custom_call.1} parent=55 // pred_check_branch
          %1485 = sbr.rel (%p1483) target = $region88
        $region87: #{tpu_custom_call.1} parent=55 // pred_region
          %1487 = vsyncadd %s1474, 0
          %s1488 = smul.addr %s36, 8
          %s1489 = scalar_lea.hbm %s9, %s1488
          %s1491 = sshll.u32 %s1477, 4
          %s1492 = int_to_ptr.vmem [resolvable:$true] %s1491
          %s1493 = sshll.u32 %s1489, 4
          %s1494 = int_to_ptr.hbm [resolvable:$true] %s1493
          %1496 = dma.vmem_to_hbm [thread:$0]  %s1492, 128, %s1494, %s1474
        $region88: #{tpu_custom_call.1} parent=55 // pred_fallthru
          _
        // Predicated region
        $region89: #{tpu_custom_call.1} parent=55 // pred_check
          %p1497 = pneg %p284
        $region90: #{tpu_custom_call.1} parent=55 // pred_check_branch
          %1499 = sbr.rel (%p1497) target = $region92
        $region91: #{tpu_custom_call.1} parent=55 // pred_region
          %s1500 = smul.u32 4, %s36
          %1502 = vsyncadd %s1479, 0
          %s1503 = smul.addr %s1500, 8
          %s1504 = scalar_lea.hbm %s10, %s1503
          %s1505 = sshll.u32 %s1482, 4
          %s1506 = int_to_ptr.vmem [resolvable:$true] %s1505
          %s1507 = sshll.u32 %s1504, 4
          %s1508 = int_to_ptr.hbm [resolvable:$true] %s1507
          %1513 = dma.vmem_to_hbm [thread:$0]  %s1506, 512, %s1508, %s1479, 128, 128, 8
        $region92: #{tpu_custom_call.1} parent=55 // pred_fallthru
          _
      $region56: #{tpu_custom_call.1} parent=5 // pred_fallthru
        _
      %p1514 = scmp.le.s32.totalorder 2, %s31
      // Predicated region
      $region93: #{tpu_custom_call.1} parent=5 // pred_check
        %p1515 = pneg %p1514
      $region94: #{tpu_custom_call.1} parent=5 // pred_check_branch
        %1517 = sbr.rel (%p1515) target = $region96
      $region95: #{tpu_custom_call.1} parent=5 // pred_region
        %s1518 = ssub.s32 %s31, 2
        // Predicated region
        $region97: #{tpu_custom_call.1} parent=95 // pred_check
          %p1519 = pneg %p264
        $region98: #{tpu_custom_call.1} parent=95 // pred_check_branch
          %1521 = sbr.rel (%p1519) target = $region100
        $region99: #{tpu_custom_call.1} parent=95 // pred_region
          %s1522 = sand.u32 %s249, 1
          %s1523 = scalar_lea.sflag [#allocation4], %s1522
          %s1524 = sand.u32 %s249, 1
          %s1525 = smul.addr %s1524, 8
          %s1526 = scalar_lea.vmem [#allocation14], %s1525
          %1528 = dma.done %s1523, 128
        $region100: #{tpu_custom_call.1} parent=95 // pred_fallthru
          _
        // Predicated region
        $region101: #{tpu_custom_call.1} parent=95 // pred_check
          %p1529 = pneg %p290
        $region102: #{tpu_custom_call.1} parent=95 // pred_check_branch
          %1531 = sbr.rel (%p1529) target = $region104
        $region103: #{tpu_custom_call.1} parent=95 // pred_region
          %s1532 = sand.u32 %s275, 1
          %s1533 = scalar_lea.sflag [#allocation16], %s1532
          %s1534 = sand.u32 %s275, 1
          %s1535 = smul.addr %s1534, 32
          %s1536 = scalar_lea.vmem [#allocation15], %s1535
          %1538 = dma.done %s1533, 512
        $region104: #{tpu_custom_call.1} parent=95 // pred_fallthru
          _
      $region96: #{tpu_custom_call.1} parent=5 // pred_fallthru
        _
    $region6: #{tpu_custom_call.1} parent=1 // loop_footer
      %s35 = sadd.s32 1, %s31
    $region7: #{tpu_custom_call.1} parent=1 // loop_footer_branch
      %30 = sbr.rel target = $region3
    $region8: #{tpu_custom_call.1} parent=1 // loop_exit
      _
    %1539 = vsyncpa [#allocation3], 1
    %s1540 = scalar_lea.sflag [#allocation3], 1
    %1541 = vsyncpa %s1540, 1
    %1542 = vsyncpa [#allocation6], 1
    %s1543 = scalar_lea.sflag [#allocation6], 1
    %1544 = vsyncpa %s1543, 1
    %1545 = vsyncpa [#allocation9], 1
    %1546 = vsyncpa [#allocation12], 1
    %1547 = vsyncpa [#allocation4], 1
    %s1548 = scalar_lea.sflag [#allocation4], 1
    %1549 = vsyncpa %s1548, 1
    %1550 = vsyncpa [#allocation16], 1
    %s1551 = scalar_lea.sflag [#allocation16], 1
    %1552 = vsyncpa %s1551, 1

</llo_original>
